<compile_context>
chip_gen: v6e
topology: v6e:2x2x1
jax: 0.10.0
libtpu: 0.0.40
codegen_flags: <defaults>
</compile_context>

<pallas_src>
import functools

import jax
import jax.numpy as jnp
from jax.experimental import pallas as pl
from jax.experimental.pallas import tpu as pltpu

HIDDEN = 128    # hidden_size in the PyTorch module
IN_SZ = 1       # input_size
OUT_SZ = 2      # output_size
OUT_PAD = 128   # FC output padded to one full lane register (unmasked store)
SUBLANES = 8    # f32 sublane count -> batch padded to a multiple of this


def lstm_fc_kernel(x_ref, w_ih_ref, w_hh_ref, b_ref, w_fc_ref, b_fc_ref,
                   out_ref, *, seq_len, batch):
    """Whole LSTM recurrence + FC in ONE kernel invocation (no per-step grid).

    x_ref   : (S, Bp, 1)  f32   time-major, batch-padded input
    w_ih_ref: (1, 4H)     f32   W_ih^T (input_size == 1)
    w_hh_ref: (H, 4H)     bf16  W_hh^T (bf16 -> MXU-native single pass)
    b_ref   : (1, 4H)     f32   b_ih + b_hh
    w_fc_ref: (H, OUT_PAD) f32  fc.weight^T zero-padded to 128 lanes
    b_fc_ref: (1, OUT_PAD) f32  fc.bias zero-padded to 128 lanes
    out_ref : (Bp, OUT_PAD) f32
    """
    H = HIDDEN

    def step(t, carry):
        h, c = carry                                   # (Bp, H) f32, vreg-resident
        # Input projection: input_size == 1 so x_t @ W_ih^T is a broadcast
        # multiply-add; pure VPU work that co-issues under the MXU op below.
        gates_x = x_ref[t] * w_ih_ref[...] + b_ref[...]            # (Bp, 4H) f32

        # Recurrent matmul in bf16 operands / f32 accumulation, split into two
        # per-gate-pair 256-wide dots so sigmoid(i), sigmoid(f) start on the
        # EUP while the MXU is still producing/draining the (g, o) half.
        h_bf = h.astype(jnp.bfloat16)
        g_if = gates_x[:, :2 * H] + jnp.dot(
            h_bf, w_hh_ref[:, :2 * H], preferred_element_type=jnp.float32)
        i_g = jax.nn.sigmoid(g_if[:, :H])
        f_g = jax.nn.sigmoid(g_if[:, H:])

        g_go = gates_x[:, 2 * H:] + jnp.dot(
            h_bf, w_hh_ref[:, 2 * H:], preferred_element_type=jnp.float32)
        g_g = jnp.tanh(g_go[:, :H])
        o_g = jax.nn.sigmoid(g_go[:, H:])

        c_new = f_g * c + i_g * g_g
        h_new = o_g * jnp.tanh(c_new)
        return h_new, c_new

    h0 = jnp.zeros((batch, H), jnp.float32)
    c0 = jnp.zeros((batch, H), jnp.float32)
    # h/c carried in vregs; partial unroll keeps LLO scheduler visibility and
    # cross-step overlap for any S without blowing vreg pressure/compile time.
    h_fin, _ = jax.lax.fori_loop(0, seq_len, step, (h0, c0),
                                 unroll=min(8, seq_len))

    # fc(hn[-1]): written exactly once, lane-dense (Bp, 128) unmasked store.
    out_ref[...] = (jnp.dot(h_fin, w_fc_ref[...],
                            preferred_element_type=jnp.float32)
                    + b_fc_ref[...])


def keypress_forward(x, w_ih, w_hh, b_ih, b_hh, fc_w, fc_b):
    """x: (B, S) float32. Returns (B, OUT_SZ) float32 (== KeypressModel.forward
    on x of shape (B, S), which the module unsqueezes to (B, S, 1))."""
    x = x.astype(jnp.float32)
    B, S = x.shape
    H = HIDDEN
    Bp = ((B + SUBLANES - 1) // SUBLANES) * SUBLANES   # pad batch to sublane width

    # Layout glue: time-major + batch padding; weights pre-transposed so every
    # in-kernel matmul is a plain `h @ W`; recurrent weight pre-cast to bf16;
    # FC padded to 128 output lanes.
    x_tm = jnp.pad(jnp.transpose(x), ((0, 0), (0, Bp - B)))        # (S, Bp)
    x_tm = x_tm.reshape(S, Bp, 1)
    w_ih_k = jnp.transpose(w_ih).reshape(1, 4 * H).astype(jnp.float32)
    w_hh_k = jnp.transpose(w_hh).astype(jnp.bfloat16)              # (H, 4H) bf16
    b_k = (b_ih + b_hh).reshape(1, 4 * H).astype(jnp.float32)
    w_fc_k = jnp.zeros((H, OUT_PAD), jnp.float32).at[:, :OUT_SZ].set(
        jnp.transpose(fc_w).astype(jnp.float32))
    b_fc_k = jnp.zeros((1, OUT_PAD), jnp.float32).at[:, :OUT_SZ].set(
        fc_b.astype(jnp.float32))

    kernel = functools.partial(lstm_fc_kernel, seq_len=S, batch=Bp)

    # Advisory cost hint for XLA's scheduler around the custom call.
    flops = S * (2 * Bp * H * 4 * H + 10 * Bp * 4 * H) + 2 * Bp * H * OUT_PAD
    transcendentals = S * 5 * Bp * H
    bytes_accessed = (x_tm.size * 4 + w_ih_k.size * 4 + w_hh_k.size * 2
                      + b_k.size * 4 + w_fc_k.size * 4 + b_fc_k.size * 4
                      + Bp * OUT_PAD * 4)

    out_pad = pl.pallas_call(
        kernel,
        out_shape=jax.ShapeDtypeStruct((Bp, OUT_PAD), jnp.float32),
        in_specs=[pl.BlockSpec(memory_space=pltpu.MemorySpace.VMEM)
                  for _ in range(6)],
        out_specs=pl.BlockSpec(memory_space=pltpu.MemorySpace.VMEM),
        cost_estimate=pl.CostEstimate(flops=flops,
                                      transcendentals=transcendentals,
                                      bytes_accessed=bytes_accessed),
    )(x_tm, w_ih_k, w_hh_k, b_k, w_fc_k, b_fc_k)

    return out_pad[:B, :OUT_SZ]


def keypress_ref(x, w_ih, w_hh, b_ih, b_hh, fc_w, fc_b):
    """Pure-JAX f32 reference matching torch.nn.LSTM + Linear semantics."""
    B, S = x.shape
    H = HIDDEN
    h = jnp.zeros((B, H), jnp.float32)
    c = jnp.zeros((B, H), jnp.float32)
    for t in range(S):
        xt = x[:, t:t + 1]                                   # (B, 1)
        gates = xt @ w_ih.T + h @ w_hh.T + b_ih + b_hh       # (B, 4H)
        i_g = jax.nn.sigmoid(gates[:, 0 * H:1 * H])
        f_g = jax.nn.sigmoid(gates[:, 1 * H:2 * H])
        g_g = jnp.tanh(gates[:, 2 * H:3 * H])
        o_g = jax.nn.sigmoid(gates[:, 3 * H:4 * H])
        c = f_g * c + i_g * g_g
        h = o_g * jnp.tanh(c)
    return h @ fc_w.T + fc_b


if __name__ == "__main__":
    key = jax.random.PRNGKey(0)
    k_x, k_wih, k_whh, k_bih, k_bhh, k_fw, k_fb = jax.random.split(key, 7)

    B, S, H = 2, 8, HIDDEN
    bound = 1.0 / jnp.sqrt(jnp.float32(H))

    # Deterministic parameter init (PyTorch shapes, gate order [i, f, g, o]).
    x = jax.random.normal(k_x, (B, S), dtype=jnp.float32)
    w_ih = jax.random.uniform(k_wih, (4 * H, IN_SZ), jnp.float32, -bound, bound)
    w_hh = jax.random.uniform(k_whh, (4 * H, H), jnp.float32, -bound, bound)
    b_ih = jax.random.uniform(k_bih, (4 * H,), jnp.float32, -bound, bound)
    b_hh = jax.random.uniform(k_bhh, (4 * H,), jnp.float32, -bound, bound)
    fc_w = jax.random.uniform(k_fw, (OUT_SZ, H), jnp.float32, -bound, bound)
    fc_b = jax.random.uniform(k_fb, (OUT_SZ,), jnp.float32, -bound, bound)

    out = keypress_forward(x, w_ih, w_hh, b_ih, b_hh, fc_w, fc_b)
    out = jax.block_until_ready(out)

    ref = keypress_ref(x, w_ih, w_hh, b_ih, b_hh, fc_w, fc_b)
    assert out.shape == (B, OUT_SZ)
    # Tolerance relaxed to 1e-2: the recurrent matmul runs with bf16 operands
    # (f32 accumulation) per the performance review.
    assert jnp.allclose(out, ref, atol=1e-2, rtol=1e-2), (out, ref)

    print("KERNEL_OK")
</pallas_src>

<mosaic_0001>
module attributes {stable_mosaic.version = 11 : i64} {
  func.func @lstm_fc_kernel(%arg0: memref<8x8x1xf32, #tpu.memory_space<vmem>>, %arg1: memref<1x512xf32, #tpu.memory_space<vmem>>, %arg2: memref<128x512xbf16, #tpu.memory_space<vmem>>, %arg3: memref<1x512xf32, #tpu.memory_space<vmem>>, %arg4: memref<128x128xf32, #tpu.memory_space<vmem>>, %arg5: memref<1x128xf32, #tpu.memory_space<vmem>>, %arg6: memref<8x128xf32, #tpu.memory_space<vmem>>) attributes {dimension_semantics = [], scalar_prefetch = 0 : i64, scratch_operands = 0 : i64, tpu.core_type = #tpu.core_type<tc>} {
    %cst = arith.constant 0.000000e+00 : f32
    %0 = vector.broadcast %cst : f32 to vector<8x128xf32>
    %cst_0 = arith.constant 0.000000e+00 : f32
    %1 = vector.broadcast %cst_0 : f32 to vector<8x128xf32>
    %c0_i32 = arith.constant 0 : i32
    %2 = arith.index_cast %c0_i32 : i32 to index
    %c0 = arith.constant 0 : index
    %c0_1 = arith.constant 0 : index
    %3 = vector.load %arg0[%2, %c0, %c0_1] : memref<8x8x1xf32, #tpu.memory_space<vmem>>, vector<1x8x1xf32>
    %4 = vector.shape_cast %3 : vector<1x8x1xf32> to vector<8x1xf32>
    %c0_2 = arith.constant 0 : index
    %c0_3 = arith.constant 0 : index
    %5 = vector.load %arg1[%c0_2, %c0_3] : memref<1x512xf32, #tpu.memory_space<vmem>>, vector<1x512xf32>
    %6 = vector.broadcast %4 : vector<8x1xf32> to vector<8x512xf32>
    %7 = vector.broadcast %5 : vector<1x512xf32> to vector<8x512xf32>
    %8 = arith.mulf %6, %7 : vector<8x512xf32>
    %c0_4 = arith.constant 0 : index
    %c0_5 = arith.constant 0 : index
    %9 = vector.load %arg3[%c0_4, %c0_5] : memref<1x512xf32, #tpu.memory_space<vmem>>, vector<1x512xf32>
    %10 = vector.broadcast %9 : vector<1x512xf32> to vector<8x512xf32>
    %11 = arith.addf %8, %10 : vector<8x512xf32>
    %12 = arith.truncf %0 : vector<8x128xf32> to vector<8x128xbf16>
    %13 = vector.extract_strided_slice %11 {offsets = [0, 0], sizes = [8, 256], strides = [1, 1]} : vector<8x512xf32> to vector<8x256xf32>
    %c0_6 = arith.constant 0 : index
    %c0_7 = arith.constant 0 : index
    %14 = vector.load %arg2[%c0_6, %c0_7] : memref<128x512xbf16, #tpu.memory_space<vmem>>, vector<128x256xbf16>
    %cst_8 = arith.constant dense<0.000000e+00> : vector<8x256xf32>
    %15 = tpu.matmul %12, %14, %cst_8 {dimension_numbers = #tpu.dot_dimension_numbers<[1], [0], [0], [1], [0, 0, 1, 1], [], []>} : vector<8x128xbf16>, vector<128x256xbf16>, vector<8x256xf32> -> vector<8x256xf32>
    %16 = arith.addf %13, %15 : vector<8x256xf32>
    %17 = vector.extract_strided_slice %16 {offsets = [0, 0], sizes = [8, 128], strides = [1, 1]} : vector<8x256xf32> to vector<8x128xf32>
    %18 = arith.negf %17 : vector<8x128xf32>
    %19 = math.exp %18 : vector<8x128xf32>
    %cst_9 = arith.constant 1.000000e+00 : f32
    %20 = vector.broadcast %cst_9 : f32 to vector<8x128xf32>
    %21 = arith.addf %20, %19 : vector<8x128xf32>
    %22 = arith.divf %20, %21 : vector<8x128xf32>
    %23 = vector.extract_strided_slice %16 {offsets = [0, 128], sizes = [8, 128], strides = [1, 1]} : vector<8x256xf32> to vector<8x128xf32>
    %24 = arith.negf %23 : vector<8x128xf32>
    %25 = math.exp %24 : vector<8x128xf32>
    %cst_10 = arith.constant 1.000000e+00 : f32
    %26 = vector.broadcast %cst_10 : f32 to vector<8x128xf32>
    %27 = arith.addf %26, %25 : vector<8x128xf32>
    %28 = arith.divf %26, %27 : vector<8x128xf32>
    %29 = vector.extract_strided_slice %11 {offsets = [0, 256], sizes = [8, 256], strides = [1, 1]} : vector<8x512xf32> to vector<8x256xf32>
    %c0_11 = arith.constant 0 : index
    %c256 = arith.constant 256 : index
    %30 = vector.load %arg2[%c0_11, %c256] : memref<128x512xbf16, #tpu.memory_space<vmem>>, vector<128x256xbf16>
    %cst_12 = arith.constant dense<0.000000e+00> : vector<8x256xf32>
    %31 = tpu.matmul %12, %30, %cst_12 {dimension_numbers = #tpu.dot_dimension_numbers<[1], [0], [0], [1], [0, 0, 1, 1], [], []>} : vector<8x128xbf16>, vector<128x256xbf16>, vector<8x256xf32> -> vector<8x256xf32>
    %32 = arith.addf %29, %31 : vector<8x256xf32>
    %33 = vector.extract_strided_slice %32 {offsets = [0, 0], sizes = [8, 128], strides = [1, 1]} : vector<8x256xf32> to vector<8x128xf32>
    %34 = math.tanh %33 : vector<8x128xf32>
    %35 = vector.extract_strided_slice %32 {offsets = [0, 128], sizes = [8, 128], strides = [1, 1]} : vector<8x256xf32> to vector<8x128xf32>
    %36 = arith.negf %35 : vector<8x128xf32>
    %37 = math.exp %36 : vector<8x128xf32>
    %cst_13 = arith.constant 1.000000e+00 : f32
    %38 = vector.broadcast %cst_13 : f32 to vector<8x128xf32>
    %39 = arith.addf %38, %37 : vector<8x128xf32>
    %40 = arith.divf %38, %39 : vector<8x128xf32>
    %41 = arith.mulf %28, %1 : vector<8x128xf32>
    %42 = arith.mulf %22, %34 : vector<8x128xf32>
    %43 = arith.addf %41, %42 : vector<8x128xf32>
    %44 = math.tanh %43 : vector<8x128xf32>
    %45 = arith.mulf %40, %44 : vector<8x128xf32>
    %c1_i32 = arith.constant 1 : i32
    %46 = arith.index_cast %c1_i32 : i32 to index
    %c0_14 = arith.constant 0 : index
    %c0_15 = arith.constant 0 : index
    %47 = vector.load %arg0[%46, %c0_14, %c0_15] : memref<8x8x1xf32, #tpu.memory_space<vmem>>, vector<1x8x1xf32>
    %48 = vector.shape_cast %47 : vector<1x8x1xf32> to vector<8x1xf32>
    %c0_16 = arith.constant 0 : index
    %c0_17 = arith.constant 0 : index
    %49 = vector.load %arg1[%c0_16, %c0_17] : memref<1x512xf32, #tpu.memory_space<vmem>>, vector<1x512xf32>
    %50 = vector.broadcast %48 : vector<8x1xf32> to vector<8x512xf32>
    %51 = vector.broadcast %49 : vector<1x512xf32> to vector<8x512xf32>
    %52 = arith.mulf %50, %51 : vector<8x512xf32>
    %c0_18 = arith.constant 0 : index
    %c0_19 = arith.constant 0 : index
    %53 = vector.load %arg3[%c0_18, %c0_19] : memref<1x512xf32, #tpu.memory_space<vmem>>, vector<1x512xf32>
    %54 = vector.broadcast %53 : vector<1x512xf32> to vector<8x512xf32>
    %55 = arith.addf %52, %54 : vector<8x512xf32>
    %56 = arith.truncf %45 : vector<8x128xf32> to vector<8x128xbf16>
    %57 = vector.extract_strided_slice %55 {offsets = [0, 0], sizes = [8, 256], strides = [1, 1]} : vector<8x512xf32> to vector<8x256xf32>
    %c0_20 = arith.constant 0 : index
    %c0_21 = arith.constant 0 : index
    %58 = vector.load %arg2[%c0_20, %c0_21] : memref<128x512xbf16, #tpu.memory_space<vmem>>, vector<128x256xbf16>
    %cst_22 = arith.constant dense<0.000000e+00> : vector<8x256xf32>
    %59 = tpu.matmul %56, %58, %cst_22 {dimension_numbers = #tpu.dot_dimension_numbers<[1], [0], [0], [1], [0, 0, 1, 1], [], []>} : vector<8x128xbf16>, vector<128x256xbf16>, vector<8x256xf32> -> vector<8x256xf32>
    %60 = arith.addf %57, %59 : vector<8x256xf32>
    %61 = vector.extract_strided_slice %60 {offsets = [0, 0], sizes = [8, 128], strides = [1, 1]} : vector<8x256xf32> to vector<8x128xf32>
    %62 = arith.negf %61 : vector<8x128xf32>
    %63 = math.exp %62 : vector<8x128xf32>
    %cst_23 = arith.constant 1.000000e+00 : f32
    %64 = vector.broadcast %cst_23 : f32 to vector<8x128xf32>
    %65 = arith.addf %64, %63 : vector<8x128xf32>
    %66 = arith.divf %64, %65 : vector<8x128xf32>
    %67 = vector.extract_strided_slice %60 {offsets = [0, 128], sizes = [8, 128], strides = [1, 1]} : vector<8x256xf32> to vector<8x128xf32>
    %68 = arith.negf %67 : vector<8x128xf32>
    %69 = math.exp %68 : vector<8x128xf32>
    %cst_24 = arith.constant 1.000000e+00 : f32
    %70 = vector.broadcast %cst_24 : f32 to vector<8x128xf32>
    %71 = arith.addf %70, %69 : vector<8x128xf32>
    %72 = arith.divf %70, %71 : vector<8x128xf32>
    %73 = vector.extract_strided_slice %55 {offsets = [0, 256], sizes = [8, 256], strides = [1, 1]} : vector<8x512xf32> to vector<8x256xf32>
    %c0_25 = arith.constant 0 : index
    %c256_26 = arith.constant 256 : index
    %74 = vector.load %arg2[%c0_25, %c256_26] : memref<128x512xbf16, #tpu.memory_space<vmem>>, vector<128x256xbf16>
    %cst_27 = arith.constant dense<0.000000e+00> : vector<8x256xf32>
    %75 = tpu.matmul %56, %74, %cst_27 {dimension_numbers = #tpu.dot_dimension_numbers<[1], [0], [0], [1], [0, 0, 1, 1], [], []>} : vector<8x128xbf16>, vector<128x256xbf16>, vector<8x256xf32> -> vector<8x256xf32>
    %76 = arith.addf %73, %75 : vector<8x256xf32>
    %77 = vector.extract_strided_slice %76 {offsets = [0, 0], sizes = [8, 128], strides = [1, 1]} : vector<8x256xf32> to vector<8x128xf32>
    %78 = math.tanh %77 : vector<8x128xf32>
    %79 = vector.extract_strided_slice %76 {offsets = [0, 128], sizes = [8, 128], strides = [1, 1]} : vector<8x256xf32> to vector<8x128xf32>
    %80 = arith.negf %79 : vector<8x128xf32>
    %81 = math.exp %80 : vector<8x128xf32>
    %cst_28 = arith.constant 1.000000e+00 : f32
    %82 = vector.broadcast %cst_28 : f32 to vector<8x128xf32>
    %83 = arith.addf %82, %81 : vector<8x128xf32>
    %84 = arith.divf %82, %83 : vector<8x128xf32>
    %85 = arith.mulf %72, %43 : vector<8x128xf32>
    %86 = arith.mulf %66, %78 : vector<8x128xf32>
    %87 = arith.addf %85, %86 : vector<8x128xf32>
    %88 = math.tanh %87 : vector<8x128xf32>
    %89 = arith.mulf %84, %88 : vector<8x128xf32>
    %c2_i32 = arith.constant 2 : i32
    %90 = arith.index_cast %c2_i32 : i32 to index
    %c0_29 = arith.constant 0 : index
    %c0_30 = arith.constant 0 : index
    %91 = vector.load %arg0[%90, %c0_29, %c0_30] : memref<8x8x1xf32, #tpu.memory_space<vmem>>, vector<1x8x1xf32>
    %92 = vector.shape_cast %91 : vector<1x8x1xf32> to vector<8x1xf32>
    %c0_31 = arith.constant 0 : index
    %c0_32 = arith.constant 0 : index
    %93 = vector.load %arg1[%c0_31, %c0_32] : memref<1x512xf32, #tpu.memory_space<vmem>>, vector<1x512xf32>
    %94 = vector.broadcast %92 : vector<8x1xf32> to vector<8x512xf32>
    %95 = vector.broadcast %93 : vector<1x512xf32> to vector<8x512xf32>
    %96 = arith.mulf %94, %95 : vector<8x512xf32>
    %c0_33 = arith.constant 0 : index
    %c0_34 = arith.constant 0 : index
    %97 = vector.load %arg3[%c0_33, %c0_34] : memref<1x512xf32, #tpu.memory_space<vmem>>, vector<1x512xf32>
    %98 = vector.broadcast %97 : vector<1x512xf32> to vector<8x512xf32>
    %99 = arith.addf %96, %98 : vector<8x512xf32>
    %100 = arith.truncf %89 : vector<8x128xf32> to vector<8x128xbf16>
    %101 = vector.extract_strided_slice %99 {offsets = [0, 0], sizes = [8, 256], strides = [1, 1]} : vector<8x512xf32> to vector<8x256xf32>
    %c0_35 = arith.constant 0 : index
    %c0_36 = arith.constant 0 : index
    %102 = vector.load %arg2[%c0_35, %c0_36] : memref<128x512xbf16, #tpu.memory_space<vmem>>, vector<128x256xbf16>
    %cst_37 = arith.constant dense<0.000000e+00> : vector<8x256xf32>
    %103 = tpu.matmul %100, %102, %cst_37 {dimension_numbers = #tpu.dot_dimension_numbers<[1], [0], [0], [1], [0, 0, 1, 1], [], []>} : vector<8x128xbf16>, vector<128x256xbf16>, vector<8x256xf32> -> vector<8x256xf32>
    %104 = arith.addf %101, %103 : vector<8x256xf32>
    %105 = vector.extract_strided_slice %104 {offsets = [0, 0], sizes = [8, 128], strides = [1, 1]} : vector<8x256xf32> to vector<8x128xf32>
    %106 = arith.negf %105 : vector<8x128xf32>
    %107 = math.exp %106 : vector<8x128xf32>
    %cst_38 = arith.constant 1.000000e+00 : f32
    %108 = vector.broadcast %cst_38 : f32 to vector<8x128xf32>
    %109 = arith.addf %108, %107 : vector<8x128xf32>
    %110 = arith.divf %108, %109 : vector<8x128xf32>
    %111 = vector.extract_strided_slice %104 {offsets = [0, 128], sizes = [8, 128], strides = [1, 1]} : vector<8x256xf32> to vector<8x128xf32>
    %112 = arith.negf %111 : vector<8x128xf32>
    %113 = math.exp %112 : vector<8x128xf32>
    %cst_39 = arith.constant 1.000000e+00 : f32
    %114 = vector.broadcast %cst_39 : f32 to vector<8x128xf32>
    %115 = arith.addf %114, %113 : vector<8x128xf32>
    %116 = arith.divf %114, %115 : vector<8x128xf32>
    %117 = vector.extract_strided_slice %99 {offsets = [0, 256], sizes = [8, 256], strides = [1, 1]} : vector<8x512xf32> to vector<8x256xf32>
    %c0_40 = arith.constant 0 : index
    %c256_41 = arith.constant 256 : index
    %118 = vector.load %arg2[%c0_40, %c256_41] : memref<128x512xbf16, #tpu.memory_space<vmem>>, vector<128x256xbf16>
    %cst_42 = arith.constant dense<0.000000e+00> : vector<8x256xf32>
    %119 = tpu.matmul %100, %118, %cst_42 {dimension_numbers = #tpu.dot_dimension_numbers<[1], [0], [0], [1], [0, 0, 1, 1], [], []>} : vector<8x128xbf16>, vector<128x256xbf16>, vector<8x256xf32> -> vector<8x256xf32>
    %120 = arith.addf %117, %119 : vector<8x256xf32>
    %121 = vector.extract_strided_slice %120 {offsets = [0, 0], sizes = [8, 128], strides = [1, 1]} : vector<8x256xf32> to vector<8x128xf32>
    %122 = math.tanh %121 : vector<8x128xf32>
    %123 = vector.extract_strided_slice %120 {offsets = [0, 128], sizes = [8, 128], strides = [1, 1]} : vector<8x256xf32> to vector<8x128xf32>
    %124 = arith.negf %123 : vector<8x128xf32>
    %125 = math.exp %124 : vector<8x128xf32>
    %cst_43 = arith.constant 1.000000e+00 : f32
    %126 = vector.broadcast %cst_43 : f32 to vector<8x128xf32>
    %127 = arith.addf %126, %125 : vector<8x128xf32>
    %128 = arith.divf %126, %127 : vector<8x128xf32>
    %129 = arith.mulf %116, %87 : vector<8x128xf32>
    %130 = arith.mulf %110, %122 : vector<8x128xf32>
    %131 = arith.addf %129, %130 : vector<8x128xf32>
    %132 = math.tanh %131 : vector<8x128xf32>
    %133 = arith.mulf %128, %132 : vector<8x128xf32>
    %c3_i32 = arith.constant 3 : i32
    %134 = arith.index_cast %c3_i32 : i32 to index
    %c0_44 = arith.constant 0 : index
    %c0_45 = arith.constant 0 : index
    %135 = vector.load %arg0[%134, %c0_44, %c0_45] : memref<8x8x1xf32, #tpu.memory_space<vmem>>, vector<1x8x1xf32>
    %136 = vector.shape_cast %135 : vector<1x8x1xf32> to vector<8x1xf32>
    %c0_46 = arith.constant 0 : index
    %c0_47 = arith.constant 0 : index
    %137 = vector.load %arg1[%c0_46, %c0_47] : memref<1x512xf32, #tpu.memory_space<vmem>>, vector<1x512xf32>
    %138 = vector.broadcast %136 : vector<8x1xf32> to vector<8x512xf32>
    %139 = vector.broadcast %137 : vector<1x512xf32> to vector<8x512xf32>
    %140 = arith.mulf %138, %139 : vector<8x512xf32>
    %c0_48 = arith.constant 0 : index
    %c0_49 = arith.constant 0 : index
    %141 = vector.load %arg3[%c0_48, %c0_49] : memref<1x512xf32, #tpu.memory_space<vmem>>, vector<1x512xf32>
    %142 = vector.broadcast %141 : vector<1x512xf32> to vector<8x512xf32>
    %143 = arith.addf %140, %142 : vector<8x512xf32>
    %144 = arith.truncf %133 : vector<8x128xf32> to vector<8x128xbf16>
    %145 = vector.extract_strided_slice %143 {offsets = [0, 0], sizes = [8, 256], strides = [1, 1]} : vector<8x512xf32> to vector<8x256xf32>
    %c0_50 = arith.constant 0 : index
    %c0_51 = arith.constant 0 : index
    %146 = vector.load %arg2[%c0_50, %c0_51] : memref<128x512xbf16, #tpu.memory_space<vmem>>, vector<128x256xbf16>
    %cst_52 = arith.constant dense<0.000000e+00> : vector<8x256xf32>
    %147 = tpu.matmul %144, %146, %cst_52 {dimension_numbers = #tpu.dot_dimension_numbers<[1], [0], [0], [1], [0, 0, 1, 1], [], []>} : vector<8x128xbf16>, vector<128x256xbf16>, vector<8x256xf32> -> vector<8x256xf32>
    %148 = arith.addf %145, %147 : vector<8x256xf32>
    %149 = vector.extract_strided_slice %148 {offsets = [0, 0], sizes = [8, 128], strides = [1, 1]} : vector<8x256xf32> to vector<8x128xf32>
    %150 = arith.negf %149 : vector<8x128xf32>
    %151 = math.exp %150 : vector<8x128xf32>
    %cst_53 = arith.constant 1.000000e+00 : f32
    %152 = vector.broadcast %cst_53 : f32 to vector<8x128xf32>
    %153 = arith.addf %152, %151 : vector<8x128xf32>
    %154 = arith.divf %152, %153 : vector<8x128xf32>
    %155 = vector.extract_strided_slice %148 {offsets = [0, 128], sizes = [8, 128], strides = [1, 1]} : vector<8x256xf32> to vector<8x128xf32>
    %156 = arith.negf %155 : vector<8x128xf32>
    %157 = math.exp %156 : vector<8x128xf32>
    %cst_54 = arith.constant 1.000000e+00 : f32
    %158 = vector.broadcast %cst_54 : f32 to vector<8x128xf32>
    %159 = arith.addf %158, %157 : vector<8x128xf32>
    %160 = arith.divf %158, %159 : vector<8x128xf32>
    %161 = vector.extract_strided_slice %143 {offsets = [0, 256], sizes = [8, 256], strides = [1, 1]} : vector<8x512xf32> to vector<8x256xf32>
    %c0_55 = arith.constant 0 : index
    %c256_56 = arith.constant 256 : index
    %162 = vector.load %arg2[%c0_55, %c256_56] : memref<128x512xbf16, #tpu.memory_space<vmem>>, vector<128x256xbf16>
    %cst_57 = arith.constant dense<0.000000e+00> : vector<8x256xf32>
    %163 = tpu.matmul %144, %162, %cst_57 {dimension_numbers = #tpu.dot_dimension_numbers<[1], [0], [0], [1], [0, 0, 1, 1], [], []>} : vector<8x128xbf16>, vector<128x256xbf16>, vector<8x256xf32> -> vector<8x256xf32>
    %164 = arith.addf %161, %163 : vector<8x256xf32>
    %165 = vector.extract_strided_slice %164 {offsets = [0, 0], sizes = [8, 128], strides = [1, 1]} : vector<8x256xf32> to vector<8x128xf32>
    %166 = math.tanh %165 : vector<8x128xf32>
    %167 = vector.extract_strided_slice %164 {offsets = [0, 128], sizes = [8, 128], strides = [1, 1]} : vector<8x256xf32> to vector<8x128xf32>
    %168 = arith.negf %167 : vector<8x128xf32>
    %169 = math.exp %168 : vector<8x128xf32>
    %cst_58 = arith.constant 1.000000e+00 : f32
    %170 = vector.broadcast %cst_58 : f32 to vector<8x128xf32>
    %171 = arith.addf %170, %169 : vector<8x128xf32>
    %172 = arith.divf %170, %171 : vector<8x128xf32>
    %173 = arith.mulf %160, %131 : vector<8x128xf32>
    %174 = arith.mulf %154, %166 : vector<8x128xf32>
    %175 = arith.addf %173, %174 : vector<8x128xf32>
    %176 = math.tanh %175 : vector<8x128xf32>
    %177 = arith.mulf %172, %176 : vector<8x128xf32>
    %c4_i32 = arith.constant 4 : i32
    %178 = arith.index_cast %c4_i32 : i32 to index
    %c0_59 = arith.constant 0 : index
    %c0_60 = arith.constant 0 : index
    %179 = vector.load %arg0[%178, %c0_59, %c0_60] : memref<8x8x1xf32, #tpu.memory_space<vmem>>, vector<1x8x1xf32>
    %180 = vector.shape_cast %179 : vector<1x8x1xf32> to vector<8x1xf32>
    %c0_61 = arith.constant 0 : index
    %c0_62 = arith.constant 0 : index
    %181 = vector.load %arg1[%c0_61, %c0_62] : memref<1x512xf32, #tpu.memory_space<vmem>>, vector<1x512xf32>
    %182 = vector.broadcast %180 : vector<8x1xf32> to vector<8x512xf32>
    %183 = vector.broadcast %181 : vector<1x512xf32> to vector<8x512xf32>
    %184 = arith.mulf %182, %183 : vector<8x512xf32>
    %c0_63 = arith.constant 0 : index
    %c0_64 = arith.constant 0 : index
    %185 = vector.load %arg3[%c0_63, %c0_64] : memref<1x512xf32, #tpu.memory_space<vmem>>, vector<1x512xf32>
    %186 = vector.broadcast %185 : vector<1x512xf32> to vector<8x512xf32>
    %187 = arith.addf %184, %186 : vector<8x512xf32>
    %188 = arith.truncf %177 : vector<8x128xf32> to vector<8x128xbf16>
    %189 = vector.extract_strided_slice %187 {offsets = [0, 0], sizes = [8, 256], strides = [1, 1]} : vector<8x512xf32> to vector<8x256xf32>
    %c0_65 = arith.constant 0 : index
    %c0_66 = arith.constant 0 : index
    %190 = vector.load %arg2[%c0_65, %c0_66] : memref<128x512xbf16, #tpu.memory_space<vmem>>, vector<128x256xbf16>
    %cst_67 = arith.constant dense<0.000000e+00> : vector<8x256xf32>
    %191 = tpu.matmul %188, %190, %cst_67 {dimension_numbers = #tpu.dot_dimension_numbers<[1], [0], [0], [1], [0, 0, 1, 1], [], []>} : vector<8x128xbf16>, vector<128x256xbf16>, vector<8x256xf32> -> vector<8x256xf32>
    %192 = arith.addf %189, %191 : vector<8x256xf32>
    %193 = vector.extract_strided_slice %192 {offsets = [0, 0], sizes = [8, 128], strides = [1, 1]} : vector<8x256xf32> to vector<8x128xf32>
    %194 = arith.negf %193 : vector<8x128xf32>
    %195 = math.exp %194 : vector<8x128xf32>
    %cst_68 = arith.constant 1.000000e+00 : f32
    %196 = vector.broadcast %cst_68 : f32 to vector<8x128xf32>
    %197 = arith.addf %196, %195 : vector<8x128xf32>
    %198 = arith.divf %196, %197 : vector<8x128xf32>
    %199 = vector.extract_strided_slice %192 {offsets = [0, 128], sizes = [8, 128], strides = [1, 1]} : vector<8x256xf32> to vector<8x128xf32>
    %200 = arith.negf %199 : vector<8x128xf32>
    %201 = math.exp %200 : vector<8x128xf32>
    %cst_69 = arith.constant 1.000000e+00 : f32
    %202 = vector.broadcast %cst_69 : f32 to vector<8x128xf32>
    %203 = arith.addf %202, %201 : vector<8x128xf32>
    %204 = arith.divf %202, %203 : vector<8x128xf32>
    %205 = vector.extract_strided_slice %187 {offsets = [0, 256], sizes = [8, 256], strides = [1, 1]} : vector<8x512xf32> to vector<8x256xf32>
    %c0_70 = arith.constant 0 : index
    %c256_71 = arith.constant 256 : index
    %206 = vector.load %arg2[%c0_70, %c256_71] : memref<128x512xbf16, #tpu.memory_space<vmem>>, vector<128x256xbf16>
    %cst_72 = arith.constant dense<0.000000e+00> : vector<8x256xf32>
    %207 = tpu.matmul %188, %206, %cst_72 {dimension_numbers = #tpu.dot_dimension_numbers<[1], [0], [0], [1], [0, 0, 1, 1], [], []>} : vector<8x128xbf16>, vector<128x256xbf16>, vector<8x256xf32> -> vector<8x256xf32>
    %208 = arith.addf %205, %207 : vector<8x256xf32>
    %209 = vector.extract_strided_slice %208 {offsets = [0, 0], sizes = [8, 128], strides = [1, 1]} : vector<8x256xf32> to vector<8x128xf32>
    %210 = math.tanh %209 : vector<8x128xf32>
    %211 = vector.extract_strided_slice %208 {offsets = [0, 128], sizes = [8, 128], strides = [1, 1]} : vector<8x256xf32> to vector<8x128xf32>
    %212 = arith.negf %211 : vector<8x128xf32>
    %213 = math.exp %212 : vector<8x128xf32>
    %cst_73 = arith.constant 1.000000e+00 : f32
    %214 = vector.broadcast %cst_73 : f32 to vector<8x128xf32>
    %215 = arith.addf %214, %213 : vector<8x128xf32>
    %216 = arith.divf %214, %215 : vector<8x128xf32>
    %217 = arith.mulf %204, %175 : vector<8x128xf32>
    %218 = arith.mulf %198, %210 : vector<8x128xf32>
    %219 = arith.addf %217, %218 : vector<8x128xf32>
    %220 = math.tanh %219 : vector<8x128xf32>
    %221 = arith.mulf %216, %220 : vector<8x128xf32>
    %c5_i32 = arith.constant 5 : i32
    %222 = arith.index_cast %c5_i32 : i32 to index
    %c0_74 = arith.constant 0 : index
    %c0_75 = arith.constant 0 : index
    %223 = vector.load %arg0[%222, %c0_74, %c0_75] : memref<8x8x1xf32, #tpu.memory_space<vmem>>, vector<1x8x1xf32>
    %224 = vector.shape_cast %223 : vector<1x8x1xf32> to vector<8x1xf32>
    %c0_76 = arith.constant 0 : index
    %c0_77 = arith.constant 0 : index
    %225 = vector.load %arg1[%c0_76, %c0_77] : memref<1x512xf32, #tpu.memory_space<vmem>>, vector<1x512xf32>
    %226 = vector.broadcast %224 : vector<8x1xf32> to vector<8x512xf32>
    %227 = vector.broadcast %225 : vector<1x512xf32> to vector<8x512xf32>
    %228 = arith.mulf %226, %227 : vector<8x512xf32>
    %c0_78 = arith.constant 0 : index
    %c0_79 = arith.constant 0 : index
    %229 = vector.load %arg3[%c0_78, %c0_79] : memref<1x512xf32, #tpu.memory_space<vmem>>, vector<1x512xf32>
    %230 = vector.broadcast %229 : vector<1x512xf32> to vector<8x512xf32>
    %231 = arith.addf %228, %230 : vector<8x512xf32>
    %232 = arith.truncf %221 : vector<8x128xf32> to vector<8x128xbf16>
    %233 = vector.extract_strided_slice %231 {offsets = [0, 0], sizes = [8, 256], strides = [1, 1]} : vector<8x512xf32> to vector<8x256xf32>
    %c0_80 = arith.constant 0 : index
    %c0_81 = arith.constant 0 : index
    %234 = vector.load %arg2[%c0_80, %c0_81] : memref<128x512xbf16, #tpu.memory_space<vmem>>, vector<128x256xbf16>
    %cst_82 = arith.constant dense<0.000000e+00> : vector<8x256xf32>
    %235 = tpu.matmul %232, %234, %cst_82 {dimension_numbers = #tpu.dot_dimension_numbers<[1], [0], [0], [1], [0, 0, 1, 1], [], []>} : vector<8x128xbf16>, vector<128x256xbf16>, vector<8x256xf32> -> vector<8x256xf32>
    %236 = arith.addf %233, %235 : vector<8x256xf32>
    %237 = vector.extract_strided_slice %236 {offsets = [0, 0], sizes = [8, 128], strides = [1, 1]} : vector<8x256xf32> to vector<8x128xf32>
    %238 = arith.negf %237 : vector<8x128xf32>
    %239 = math.exp %238 : vector<8x128xf32>
    %cst_83 = arith.constant 1.000000e+00 : f32
    %240 = vector.broadcast %cst_83 : f32 to vector<8x128xf32>
    %241 = arith.addf %240, %239 : vector<8x128xf32>
    %242 = arith.divf %240, %241 : vector<8x128xf32>
    %243 = vector.extract_strided_slice %236 {offsets = [0, 128], sizes = [8, 128], strides = [1, 1]} : vector<8x256xf32> to vector<8x128xf32>
    %244 = arith.negf %243 : vector<8x128xf32>
    %245 = math.exp %244 : vector<8x128xf32>
    %cst_84 = arith.constant 1.000000e+00 : f32
    %246 = vector.broadcast %cst_84 : f32 to vector<8x128xf32>
    %247 = arith.addf %246, %245 : vector<8x128xf32>
    %248 = arith.divf %246, %247 : vector<8x128xf32>
    %249 = vector.extract_strided_slice %231 {offsets = [0, 256], sizes = [8, 256], strides = [1, 1]} : vector<8x512xf32> to vector<8x256xf32>
    %c0_85 = arith.constant 0 : index
    %c256_86 = arith.constant 256 : index
    %250 = vector.load %arg2[%c0_85, %c256_86] : memref<128x512xbf16, #tpu.memory_space<vmem>>, vector<128x256xbf16>
    %cst_87 = arith.constant dense<0.000000e+00> : vector<8x256xf32>
    %251 = tpu.matmul %232, %250, %cst_87 {dimension_numbers = #tpu.dot_dimension_numbers<[1], [0], [0], [1], [0, 0, 1, 1], [], []>} : vector<8x128xbf16>, vector<128x256xbf16>, vector<8x256xf32> -> vector<8x256xf32>
    %252 = arith.addf %249, %251 : vector<8x256xf32>
    %253 = vector.extract_strided_slice %252 {offsets = [0, 0], sizes = [8, 128], strides = [1, 1]} : vector<8x256xf32> to vector<8x128xf32>
    %254 = math.tanh %253 : vector<8x128xf32>
    %255 = vector.extract_strided_slice %252 {offsets = [0, 128], sizes = [8, 128], strides = [1, 1]} : vector<8x256xf32> to vector<8x128xf32>
    %256 = arith.negf %255 : vector<8x128xf32>
    %257 = math.exp %256 : vector<8x128xf32>
    %cst_88 = arith.constant 1.000000e+00 : f32
    %258 = vector.broadcast %cst_88 : f32 to vector<8x128xf32>
    %259 = arith.addf %258, %257 : vector<8x128xf32>
    %260 = arith.divf %258, %259 : vector<8x128xf32>
    %261 = arith.mulf %248, %219 : vector<8x128xf32>
    %262 = arith.mulf %242, %254 : vector<8x128xf32>
    %263 = arith.addf %261, %262 : vector<8x128xf32>
    %264 = math.tanh %263 : vector<8x128xf32>
    %265 = arith.mulf %260, %264 : vector<8x128xf32>
    %c6_i32 = arith.constant 6 : i32
    %266 = arith.index_cast %c6_i32 : i32 to index
    %c0_89 = arith.constant 0 : index
    %c0_90 = arith.constant 0 : index
    %267 = vector.load %arg0[%266, %c0_89, %c0_90] : memref<8x8x1xf32, #tpu.memory_space<vmem>>, vector<1x8x1xf32>
    %268 = vector.shape_cast %267 : vector<1x8x1xf32> to vector<8x1xf32>
    %c0_91 = arith.constant 0 : index
    %c0_92 = arith.constant 0 : index
    %269 = vector.load %arg1[%c0_91, %c0_92] : memref<1x512xf32, #tpu.memory_space<vmem>>, vector<1x512xf32>
    %270 = vector.broadcast %268 : vector<8x1xf32> to vector<8x512xf32>
    %271 = vector.broadcast %269 : vector<1x512xf32> to vector<8x512xf32>
    %272 = arith.mulf %270, %271 : vector<8x512xf32>
    %c0_93 = arith.constant 0 : index
    %c0_94 = arith.constant 0 : index
    %273 = vector.load %arg3[%c0_93, %c0_94] : memref<1x512xf32, #tpu.memory_space<vmem>>, vector<1x512xf32>
    %274 = vector.broadcast %273 : vector<1x512xf32> to vector<8x512xf32>
    %275 = arith.addf %272, %274 : vector<8x512xf32>
    %276 = arith.truncf %265 : vector<8x128xf32> to vector<8x128xbf16>
    %277 = vector.extract_strided_slice %275 {offsets = [0, 0], sizes = [8, 256], strides = [1, 1]} : vector<8x512xf32> to vector<8x256xf32>
    %c0_95 = arith.constant 0 : index
    %c0_96 = arith.constant 0 : index
    %278 = vector.load %arg2[%c0_95, %c0_96] : memref<128x512xbf16, #tpu.memory_space<vmem>>, vector<128x256xbf16>
    %cst_97 = arith.constant dense<0.000000e+00> : vector<8x256xf32>
    %279 = tpu.matmul %276, %278, %cst_97 {dimension_numbers = #tpu.dot_dimension_numbers<[1], [0], [0], [1], [0, 0, 1, 1], [], []>} : vector<8x128xbf16>, vector<128x256xbf16>, vector<8x256xf32> -> vector<8x256xf32>
    %280 = arith.addf %277, %279 : vector<8x256xf32>
    %281 = vector.extract_strided_slice %280 {offsets = [0, 0], sizes = [8, 128], strides = [1, 1]} : vector<8x256xf32> to vector<8x128xf32>
    %282 = arith.negf %281 : vector<8x128xf32>
    %283 = math.exp %282 : vector<8x128xf32>
    %cst_98 = arith.constant 1.000000e+00 : f32
    %284 = vector.broadcast %cst_98 : f32 to vector<8x128xf32>
    %285 = arith.addf %284, %283 : vector<8x128xf32>
    %286 = arith.divf %284, %285 : vector<8x128xf32>
    %287 = vector.extract_strided_slice %280 {offsets = [0, 128], sizes = [8, 128], strides = [1, 1]} : vector<8x256xf32> to vector<8x128xf32>
    %288 = arith.negf %287 : vector<8x128xf32>
    %289 = math.exp %288 : vector<8x128xf32>
    %cst_99 = arith.constant 1.000000e+00 : f32
    %290 = vector.broadcast %cst_99 : f32 to vector<8x128xf32>
    %291 = arith.addf %290, %289 : vector<8x128xf32>
    %292 = arith.divf %290, %291 : vector<8x128xf32>
    %293 = vector.extract_strided_slice %275 {offsets = [0, 256], sizes = [8, 256], strides = [1, 1]} : vector<8x512xf32> to vector<8x256xf32>
    %c0_100 = arith.constant 0 : index
    %c256_101 = arith.constant 256 : index
    %294 = vector.load %arg2[%c0_100, %c256_101] : memref<128x512xbf16, #tpu.memory_space<vmem>>, vector<128x256xbf16>
    %cst_102 = arith.constant dense<0.000000e+00> : vector<8x256xf32>
    %295 = tpu.matmul %276, %294, %cst_102 {dimension_numbers = #tpu.dot_dimension_numbers<[1], [0], [0], [1], [0, 0, 1, 1], [], []>} : vector<8x128xbf16>, vector<128x256xbf16>, vector<8x256xf32> -> vector<8x256xf32>
    %296 = arith.addf %293, %295 : vector<8x256xf32>
    %297 = vector.extract_strided_slice %296 {offsets = [0, 0], sizes = [8, 128], strides = [1, 1]} : vector<8x256xf32> to vector<8x128xf32>
    %298 = math.tanh %297 : vector<8x128xf32>
    %299 = vector.extract_strided_slice %296 {offsets = [0, 128], sizes = [8, 128], strides = [1, 1]} : vector<8x256xf32> to vector<8x128xf32>
    %300 = arith.negf %299 : vector<8x128xf32>
    %301 = math.exp %300 : vector<8x128xf32>
    %cst_103 = arith.constant 1.000000e+00 : f32
    %302 = vector.broadcast %cst_103 : f32 to vector<8x128xf32>
    %303 = arith.addf %302, %301 : vector<8x128xf32>
    %304 = arith.divf %302, %303 : vector<8x128xf32>
    %305 = arith.mulf %292, %263 : vector<8x128xf32>
    %306 = arith.mulf %286, %298 : vector<8x128xf32>
    %307 = arith.addf %305, %306 : vector<8x128xf32>
    %308 = math.tanh %307 : vector<8x128xf32>
    %309 = arith.mulf %304, %308 : vector<8x128xf32>
    %c7_i32 = arith.constant 7 : i32
    %310 = arith.index_cast %c7_i32 : i32 to index
    %c0_104 = arith.constant 0 : index
    %c0_105 = arith.constant 0 : index
    %311 = vector.load %arg0[%310, %c0_104, %c0_105] : memref<8x8x1xf32, #tpu.memory_space<vmem>>, vector<1x8x1xf32>
    %312 = vector.shape_cast %311 : vector<1x8x1xf32> to vector<8x1xf32>
    %c0_106 = arith.constant 0 : index
    %c0_107 = arith.constant 0 : index
    %313 = vector.load %arg1[%c0_106, %c0_107] : memref<1x512xf32, #tpu.memory_space<vmem>>, vector<1x512xf32>
    %314 = vector.broadcast %312 : vector<8x1xf32> to vector<8x512xf32>
    %315 = vector.broadcast %313 : vector<1x512xf32> to vector<8x512xf32>
    %316 = arith.mulf %314, %315 : vector<8x512xf32>
    %c0_108 = arith.constant 0 : index
    %c0_109 = arith.constant 0 : index
    %317 = vector.load %arg3[%c0_108, %c0_109] : memref<1x512xf32, #tpu.memory_space<vmem>>, vector<1x512xf32>
    %318 = vector.broadcast %317 : vector<1x512xf32> to vector<8x512xf32>
    %319 = arith.addf %316, %318 : vector<8x512xf32>
    %320 = arith.truncf %309 : vector<8x128xf32> to vector<8x128xbf16>
    %321 = vector.extract_strided_slice %319 {offsets = [0, 0], sizes = [8, 256], strides = [1, 1]} : vector<8x512xf32> to vector<8x256xf32>
    %c0_110 = arith.constant 0 : index
    %c0_111 = arith.constant 0 : index
    %322 = vector.load %arg2[%c0_110, %c0_111] : memref<128x512xbf16, #tpu.memory_space<vmem>>, vector<128x256xbf16>
    %cst_112 = arith.constant dense<0.000000e+00> : vector<8x256xf32>
    %323 = tpu.matmul %320, %322, %cst_112 {dimension_numbers = #tpu.dot_dimension_numbers<[1], [0], [0], [1], [0, 0, 1, 1], [], []>} : vector<8x128xbf16>, vector<128x256xbf16>, vector<8x256xf32> -> vector<8x256xf32>
    %324 = arith.addf %321, %323 : vector<8x256xf32>
    %325 = vector.extract_strided_slice %324 {offsets = [0, 0], sizes = [8, 128], strides = [1, 1]} : vector<8x256xf32> to vector<8x128xf32>
    %326 = arith.negf %325 : vector<8x128xf32>
    %327 = math.exp %326 : vector<8x128xf32>
    %cst_113 = arith.constant 1.000000e+00 : f32
    %328 = vector.broadcast %cst_113 : f32 to vector<8x128xf32>
    %329 = arith.addf %328, %327 : vector<8x128xf32>
    %330 = arith.divf %328, %329 : vector<8x128xf32>
    %331 = vector.extract_strided_slice %324 {offsets = [0, 128], sizes = [8, 128], strides = [1, 1]} : vector<8x256xf32> to vector<8x128xf32>
    %332 = arith.negf %331 : vector<8x128xf32>
    %333 = math.exp %332 : vector<8x128xf32>
    %cst_114 = arith.constant 1.000000e+00 : f32
    %334 = vector.broadcast %cst_114 : f32 to vector<8x128xf32>
    %335 = arith.addf %334, %333 : vector<8x128xf32>
    %336 = arith.divf %334, %335 : vector<8x128xf32>
    %337 = vector.extract_strided_slice %319 {offsets = [0, 256], sizes = [8, 256], strides = [1, 1]} : vector<8x512xf32> to vector<8x256xf32>
    %c0_115 = arith.constant 0 : index
    %c256_116 = arith.constant 256 : index
    %338 = vector.load %arg2[%c0_115, %c256_116] : memref<128x512xbf16, #tpu.memory_space<vmem>>, vector<128x256xbf16>
    %cst_117 = arith.constant dense<0.000000e+00> : vector<8x256xf32>
    %339 = tpu.matmul %320, %338, %cst_117 {dimension_numbers = #tpu.dot_dimension_numbers<[1], [0], [0], [1], [0, 0, 1, 1], [], []>} : vector<8x128xbf16>, vector<128x256xbf16>, vector<8x256xf32> -> vector<8x256xf32>
    %340 = arith.addf %337, %339 : vector<8x256xf32>
    %341 = vector.extract_strided_slice %340 {offsets = [0, 0], sizes = [8, 128], strides = [1, 1]} : vector<8x256xf32> to vector<8x128xf32>
    %342 = math.tanh %341 : vector<8x128xf32>
    %343 = vector.extract_strided_slice %340 {offsets = [0, 128], sizes = [8, 128], strides = [1, 1]} : vector<8x256xf32> to vector<8x128xf32>
    %344 = arith.negf %343 : vector<8x128xf32>
    %345 = math.exp %344 : vector<8x128xf32>
    %cst_118 = arith.constant 1.000000e+00 : f32
    %346 = vector.broadcast %cst_118 : f32 to vector<8x128xf32>
    %347 = arith.addf %346, %345 : vector<8x128xf32>
    %348 = arith.divf %346, %347 : vector<8x128xf32>
    %349 = arith.mulf %336, %307 : vector<8x128xf32>
    %350 = arith.mulf %330, %342 : vector<8x128xf32>
    %351 = arith.addf %349, %350 : vector<8x128xf32>
    %352 = math.tanh %351 : vector<8x128xf32>
    %353 = arith.mulf %348, %352 : vector<8x128xf32>
    %c8_i32 = arith.constant 8 : i32
    %c0_119 = arith.constant 0 : index
    %c0_120 = arith.constant 0 : index
    %354 = vector.load %arg4[%c0_119, %c0_120] : memref<128x128xf32, #tpu.memory_space<vmem>>, vector<128x128xf32>
    %cst_121 = arith.constant dense<0.000000e+00> : vector<8x128xf32>
    %355 = tpu.matmul %353, %354, %cst_121 {dimension_numbers = #tpu.dot_dimension_numbers<[1], [0], [0], [1], [0, 0, 1, 1], [], []>} : vector<8x128xf32>, vector<128x128xf32>, vector<8x128xf32> -> vector<8x128xf32>
    %c0_122 = arith.constant 0 : index
    %c0_123 = arith.constant 0 : index
    %356 = vector.load %arg5[%c0_122, %c0_123] : memref<1x128xf32, #tpu.memory_space<vmem>>, vector<1x128xf32>
    %357 = vector.broadcast %356 : vector<1x128xf32> to vector<8x128xf32>
    %358 = arith.addf %355, %357 : vector<8x128xf32>
    %c0_124 = arith.constant 0 : index
    %c0_125 = arith.constant 0 : index
    %359 = vector.load %arg6[%c0_124, %c0_125] : memref<8x128xf32, #tpu.memory_space<vmem>>, vector<8x128xf32>
    tpu.vector_store %arg6[%c0_124, %c0_125], %358 {strides = array<i32>} : memref<8x128xf32, #tpu.memory_space<vmem>>, vector<8x128xf32>,
    return
  }
}

</mosaic_0001>

<llo_original>
// kernel: tpu_custom_call.1
$region0: #{tpu_custom_call.1}
  #allocation0 [shape = 'u32[]', space=smem, size = 0x4, offset = 0x4, fixed_abs, tag = 'smem constant byte address 0x4 - core index']
  #allocation1 [shape = 'u32[144,128]{1,0:T(1,128)}', space=vmem, size = 0x12000, scoped, tag = 'internal scratch']
  %s0 = inlined_call_operand.vmem [shape: f32[8,8,1], index: 0, kind: input, shape index: {}]
  %s1 = inlined_call_operand.vmem [shape: f32[1,512], index: 1, kind: input, shape index: {}]
  %s2 = inlined_call_operand.hbm [shape: bf16[128,512], index: 2, kind: input, shape index: {}]
  %s3 = inlined_call_operand.vmem [shape: f32[1,512], index: 3, kind: input, shape index: {}]
  %s4 = inlined_call_operand.hbm [shape: f32[128,128], index: 4, kind: input, shape index: {}]
  %s5 = inlined_call_operand.vmem [shape: f32[1,128], index: 5, kind: input, shape index: {}]
  %s6 = inlined_call_operand.hbm [shape: f32[8,128], index: 6, kind: output, shape index: {}]
  %s7 = sld [smem:[#allocation0]]
  $region42: #{tpu_custom_call.1} parent=0
    _
  %s9 = ssub.s32 1, %s7
  %s10 = scalar_select 0, %s9, %s7
  $region1: #{tpu_custom_call.1} parent=0
    #allocation2 [shape = 'u8[131072]{0}', space=vmem, size = 0x20000, scoped, tag = 'input window, operand 2, single buffered']
    #allocation3 [shape = 's32[1]{0}', space=sflag, size = 0x4, scoped, tag = 'scoped memory for tpu_custom_call.1']
    #allocation4 [shape = 's32[1]{0}', space=sflag, size = 0x4, scoped, tag = 'scoped memory for tpu_custom_call.1']
    #allocation5 [shape = 'u8[65536]{0}', space=vmem, size = 0x10000, scoped, tag = 'input window, operand 4, single buffered']
    #allocation6 [shape = 's32[1]{0}', space=sflag, size = 0x4, scoped, tag = 'scoped memory for tpu_custom_call.1']
    #allocation7 [shape = 'u8[4096]{0}', space=vmem, size = 0x1000, scoped, tag = 'output window, operand 0, single buffered']
    %11 = vsyncpa [#allocation3], 0
    %12 = vsyncpa [#allocation6], 0
    %13 = vsyncpa [#allocation4], 0
    // Predicated region
    $region2: #{tpu_custom_call.1} parent=1 // pred_check
      _
    $region3: #{tpu_custom_call.1} parent=1 // pred_check_branch
      %15 = sbr.rel (0) target = $region5
    $region4: #{tpu_custom_call.1} parent=1 // pred_region
      _
    $region5: #{tpu_custom_call.1} parent=1 // pred_fallthru
      _
    // Predicated region
    $region6: #{tpu_custom_call.1} parent=1 // pred_check
      _
    $region7: #{tpu_custom_call.1} parent=1 // pred_check_branch
      %17 = sbr.rel (0) target = $region9
    $region8: #{tpu_custom_call.1} parent=1 // pred_region
      _
    $region9: #{tpu_custom_call.1} parent=1 // pred_fallthru
      _
    // Predicated region
    $region10: #{tpu_custom_call.1} parent=1 // pred_check
      _
    $region11: #{tpu_custom_call.1} parent=1 // pred_check_branch
      %19 = sbr.rel (0) target = $region13
    $region12: #{tpu_custom_call.1} parent=1 // pred_region
      %s21 = ssub.s32 4096, 4096
      %22 = vsyncadd [#allocation3], %s21
      %s23 = sshll.u32 [#allocation2], 4
      %s24 = int_to_ptr.vmem [resolvable:$true] %s23
      %29 = dma.hbm_to_vmem [thread:$0]  %s2, 4096, %s24, [#allocation3], 256, 256, 16
    $region13: #{tpu_custom_call.1} parent=1 // pred_fallthru
      _
    // Predicated region
    $region14: #{tpu_custom_call.1} parent=1 // pred_check
      _
    $region15: #{tpu_custom_call.1} parent=1 // pred_check_branch
      %31 = sbr.rel (0) target = $region17
    $region16: #{tpu_custom_call.1} parent=1 // pred_region
      _
    $region17: #{tpu_custom_call.1} parent=1 // pred_fallthru
      _
    // Predicated region
    $region18: #{tpu_custom_call.1} parent=1 // pred_check
      _
    $region19: #{tpu_custom_call.1} parent=1 // pred_check_branch
      %33 = sbr.rel (0) target = $region21
    $region20: #{tpu_custom_call.1} parent=1 // pred_region
      %s35 = ssub.s32 2048, 2048
      %36 = vsyncadd [#allocation6], %s35
      %s37 = sshll.u32 [#allocation5], 4
      %s38 = int_to_ptr.vmem [resolvable:$true] %s37
      %43 = dma.hbm_to_vmem [thread:$0]  %s4, 2048, %s38, [#allocation6], 128, 128, 8
    $region21: #{tpu_custom_call.1} parent=1 // pred_fallthru
      _
    // Predicated region
    $region22: #{tpu_custom_call.1} parent=1 // pred_check
      _
    $region23: #{tpu_custom_call.1} parent=1 // pred_check_branch
      %45 = sbr.rel (0) target = $region25
    $region24: #{tpu_custom_call.1} parent=1 // pred_region
      _
    $region25: #{tpu_custom_call.1} parent=1 // pred_fallthru
      _
    // Predicated region
    $region26: #{tpu_custom_call.1} parent=1 // pred_check
      _
    $region27: #{tpu_custom_call.1} parent=1 // pred_check_branch
      %47 = sbr.rel (0) target = $region29
    $region28: #{tpu_custom_call.1} parent=1 // pred_region
      %48 = dma.done [#allocation3], 4096
    $region29: #{tpu_custom_call.1} parent=1 // pred_fallthru
      _
    // Predicated region
    $region30: #{tpu_custom_call.1} parent=1 // pred_check
      _
    $region31: #{tpu_custom_call.1} parent=1 // pred_check_branch
      %50 = sbr.rel (0) target = $region33
    $region32: #{tpu_custom_call.1} parent=1 // pred_region
      %51 = dma.done [#allocation6], 2048
    $region33: #{tpu_custom_call.1} parent=1 // pred_fallthru
      _
    %v53 = vld [vmem:[%s0] sm:$0xff]
    %v54 = vld [vmem:[%s1] sm:$0xf]
    %56 = vset.pattern.permute.xlu0 0
    %57 = vperm.xlu0 %56, %v53
    %v58 = vpop.permute.xlu0 %57
    %v61 = vlaneseq
    %v62 = vshrl.u32 %v61, 7
    %v63 = vsub.s32 0, %v62
    %v64 = vrot.slane %v54, %v63
    %v65 = vlaneseq
    %v66 = vshrl.u32 %v65, 7
    %v67 = vsub.s32 1, %v66
    %v68 = vrot.slane %v54, %v67
    %v69 = vlaneseq
    %v70 = vshrl.u32 %v69, 7
    %v71 = vsub.s32 2, %v70
    %v72 = vrot.slane %v54, %v71
    %v73 = vlaneseq
    %v74 = vshrl.u32 %v73, 7
    %v75 = vsub.s32 3, %v74
    %v76 = vrot.slane %v54, %v75
    %v81 = vmul.f32 %v58, %v64
    %v82 = vmul.f32 %v58, %v68
    %v83 = vmul.f32 %v58, %v72
    %v84 = vmul.f32 %v58, %v76
    %v85 = vld [vmem:[%s3] sm:$0xf]
    %v87 = vlaneseq
    %v88 = vshrl.u32 %v87, 7
    %v89 = vsub.s32 0, %v88
    %v90 = vrot.slane %v85, %v89
    %v91 = vlaneseq
    %v92 = vshrl.u32 %v91, 7
    %v93 = vsub.s32 1, %v92
    %v94 = vrot.slane %v85, %v93
    %v95 = vlaneseq
    %v96 = vshrl.u32 %v95, 7
    %v97 = vsub.s32 2, %v96
    %v98 = vrot.slane %v85, %v97
    %v99 = vlaneseq
    %v100 = vshrl.u32 %v99, 7
    %v101 = vsub.s32 3, %v100
    %v102 = vrot.slane %v85, %v101
    %v107 = vadd.f32 %v81, %v90
    %v108 = vadd.f32 %v82, %v94
    %v109 = vadd.f32 %v83, %v98
    %v110 = vadd.f32 %v84, %v102
    %v111 = vld [vmem:[#allocation2] sm:$0xff]
    %v112 = vld [vmem:[#allocation2 + $0x10] sm:$0xff]
    %v113 = vld [vmem:[#allocation2 + $0x20] sm:$0xff]
    %v114 = vld [vmem:[#allocation2 + $0x30] sm:$0xff]
    %v115 = vld [vmem:[#allocation2 + $0x40] sm:$0xff]
    %v116 = vld [vmem:[#allocation2 + $0x50] sm:$0xff]
    %v117 = vld [vmem:[#allocation2 + $0x60] sm:$0xff]
    %v118 = vld [vmem:[#allocation2 + $0x70] sm:$0xff]
    %v119 = vld [vmem:[#allocation2 + $0x80] sm:$0xff]
    %v120 = vld [vmem:[#allocation2 + $0x90] sm:$0xff]
    %v121 = vld [vmem:[#allocation2 + $0xa0] sm:$0xff]
    %v122 = vld [vmem:[#allocation2 + $0xb0] sm:$0xff]
    %v123 = vld [vmem:[#allocation2 + $0xc0] sm:$0xff]
    %v124 = vld [vmem:[#allocation2 + $0xd0] sm:$0xff]
    %v125 = vld [vmem:[#allocation2 + $0xe0] sm:$0xff]
    %v126 = vld [vmem:[#allocation2 + $0xf0] sm:$0xff]
    %v143 = vunpack.c.l.b16 %v111
    %v144 = vunpack.c.h.b16 %v111
    %v145 = vunpack.c.l.b16 %v112
    %v146 = vunpack.c.h.b16 %v112
    %v147 = vunpack.c.l.b16 %v113
    %v148 = vunpack.c.h.b16 %v113
    %v149 = vunpack.c.l.b16 %v114
    %v150 = vunpack.c.h.b16 %v114
    %v151 = vunpack.c.l.b16 %v115
    %v152 = vunpack.c.h.b16 %v115
    %v153 = vunpack.c.l.b16 %v116
    %v154 = vunpack.c.h.b16 %v116
    %v155 = vunpack.c.l.b16 %v117
    %v156 = vunpack.c.h.b16 %v117
    %v157 = vunpack.c.l.b16 %v118
    %v158 = vunpack.c.h.b16 %v118
    %v159 = vunpack.c.l.b16 %v119
    %v160 = vunpack.c.h.b16 %v119
    %v161 = vunpack.c.l.b16 %v120
    %v162 = vunpack.c.h.b16 %v120
    %v163 = vunpack.c.l.b16 %v121
    %v164 = vunpack.c.h.b16 %v121
    %v165 = vunpack.c.l.b16 %v122
    %v166 = vunpack.c.h.b16 %v122
    %v167 = vunpack.c.l.b16 %v123
    %v168 = vunpack.c.h.b16 %v123
    %v169 = vunpack.c.l.b16 %v124
    %v170 = vunpack.c.h.b16 %v124
    %v171 = vunpack.c.l.b16 %v125
    %v172 = vunpack.c.h.b16 %v125
    %v173 = vunpack.c.l.b16 %v126
    %v174 = vunpack.c.h.b16 %v126
    %v175 = vpack.c.b16 %v145, %v143
    %v176 = vpack.c.b16 %v146, %v144
    %v177 = vpack.c.b16 %v149, %v147
    %v178 = vpack.c.b16 %v150, %v148
    %v179 = vpack.c.b16 %v153, %v151
    %v180 = vpack.c.b16 %v154, %v152
    %v181 = vpack.c.b16 %v157, %v155
    %v182 = vpack.c.b16 %v158, %v156
    %v183 = vpack.c.b16 %v161, %v159
    %v184 = vpack.c.b16 %v162, %v160
    %v185 = vpack.c.b16 %v165, %v163
    %v186 = vpack.c.b16 %v166, %v164
    %v187 = vpack.c.b16 %v169, %v167
    %v188 = vpack.c.b16 %v170, %v168
    %v189 = vpack.c.b16 %v173, %v171
    %v190 = vpack.c.b16 %v174, %v172
    %207 = vmatprep.subr.bf16.mxu0 %v190
    %208 = vmatpush1.bf16.msra.mxu0 %v189
    %209 = vmatprep.subr.bf16.mxu0 %v188
    %210 = vmatpush1.bf16.msra.mxu0 %v187
    %211 = vmatprep.subr.bf16.mxu0 %v186
    %212 = vmatpush1.bf16.msra.mxu0 %v185
    %213 = vmatprep.subr.bf16.mxu0 %v184
    %214 = vmatpush1.bf16.msra.mxu0 %v183
    %215 = vmatprep.subr.bf16.mxu0 %v182
    %216 = vmatpush1.bf16.msra.mxu0 %v181
    %217 = vmatprep.subr.bf16.mxu0 %v180
    %218 = vmatpush1.bf16.msra.mxu0 %v179
    %219 = vmatprep.subr.bf16.mxu0 %v178
    %220 = vmatpush1.bf16.msra.mxu0 %v177
    %221 = vmatprep.subr.bf16.mxu0 %v176
    %222 = vmatpush1.bf16.msra.mxu0 %v175
    %223 = vmatprep.subr.bf16.mxu0 0
    %224 = vmatpush2.bf16.msra.mxu0 0
    %225 = vmatprep.subr.bf16.mxu0 0
    %226 = vmatpush2.bf16.msra.mxu0 0
    %227 = vmatprep.subr.bf16.mxu0 0
    %228 = vmatpush2.bf16.msra.mxu0 0
    %229 = vmatprep.subr.bf16.mxu0 0
    %230 = vmatpush2.bf16.msra.mxu0 0
    %231 = vmatprep.subr.bf16.mxu0 0
    %232 = vmatpush2.bf16.msra.mxu0 0
    %233 = vmatprep.subr.bf16.mxu0 0
    %234 = vmatpush2.bf16.msra.mxu0 0
    %235 = vmatprep.subr.bf16.mxu0 0
    %236 = vmatpush2.bf16.msra.mxu0 0
    %237 = vmatprep.subr.bf16.mxu0 0
    %238 = vmatpush2.bf16.msra.mxu0 0
    %239 = vmatprep.mubr.bf16.mxu0 0
    %240 = vmatmul.mubr.bf16.gmra.mxu0 0
    %v241 = vpop.f32.mrf.mxu0
    %v242 = vadd.f32 0.0, %v241
    %v243 = vpop.f32.mrf.mxu0
    %v244 = vadd.f32 0.0, %v243
    %v245 = vpop.f32.mrf.mxu0
    %v246 = vpop.f32.mrf.mxu0
    %247 = vdwg.mxu0
    %v248 = vadd.f32 %v107, %v242
    %v249 = vadd.f32 %v108, %v244
    %v250 = vxor.u32 %v248, 2147483648
    %v251 = vmul.f32 %v250, 1.442695
    %v252 = vpow.pop %v251
    %v253 = vadd.f32 %v252, 1.0
    %v254 = vrcp.pop %v253
    %v255 = vmul.f32 1.0, %v254
    %v256 = vxor.u32 %v249, 2147483648
    %v257 = vmul.f32 %v256, 1.442695
    %v258 = vpow.pop %v257
    %v259 = vadd.f32 %v258, 1.0
    %v260 = vrcp.pop %v259
    %v261 = vmul.f32 1.0, %v260
    %v262 = vld [vmem:[#allocation2 + $0x8] sm:$0xff]
    %v263 = vld [vmem:[#allocation2 + $0x18] sm:$0xff]
    %v264 = vld [vmem:[#allocation2 + $0x28] sm:$0xff]
    %v265 = vld [vmem:[#allocation2 + $0x38] sm:$0xff]
    %v266 = vld [vmem:[#allocation2 + $0x48] sm:$0xff]
    %v267 = vld [vmem:[#allocation2 + $0x58] sm:$0xff]
    %v268 = vld [vmem:[#allocation2 + $0x68] sm:$0xff]
    %v269 = vld [vmem:[#allocation2 + $0x78] sm:$0xff]
    %v270 = vld [vmem:[#allocation2 + $0x88] sm:$0xff]
    %v271 = vld [vmem:[#allocation2 + $0x98] sm:$0xff]
    %v272 = vld [vmem:[#allocation2 + $0xa8] sm:$0xff]
    %v273 = vld [vmem:[#allocation2 + $0xb8] sm:$0xff]
    %v274 = vld [vmem:[#allocation2 + $0xc8] sm:$0xff]
    %v275 = vld [vmem:[#allocation2 + $0xd8] sm:$0xff]
    %v276 = vld [vmem:[#allocation2 + $0xe8] sm:$0xff]
    %v277 = vld [vmem:[#allocation2 + $0xf8] sm:$0xff]
    %v294 = vunpack.c.l.b16 %v262
    %v295 = vunpack.c.h.b16 %v262
    %v296 = vunpack.c.l.b16 %v263
    %v297 = vunpack.c.h.b16 %v263
    %v298 = vunpack.c.l.b16 %v264
    %v299 = vunpack.c.h.b16 %v264
    %v300 = vunpack.c.l.b16 %v265
    %v301 = vunpack.c.h.b16 %v265
    %v302 = vunpack.c.l.b16 %v266
    %v303 = vunpack.c.h.b16 %v266
    %v304 = vunpack.c.l.b16 %v267
    %v305 = vunpack.c.h.b16 %v267
    %v306 = vunpack.c.l.b16 %v268
    %v307 = vunpack.c.h.b16 %v268
    %v308 = vunpack.c.l.b16 %v269
    %v309 = vunpack.c.h.b16 %v269
    %v310 = vunpack.c.l.b16 %v270
    %v311 = vunpack.c.h.b16 %v270
    %v312 = vunpack.c.l.b16 %v271
    %v313 = vunpack.c.h.b16 %v271
    %v314 = vunpack.c.l.b16 %v272
    %v315 = vunpack.c.h.b16 %v272
    %v316 = vunpack.c.l.b16 %v273
    %v317 = vunpack.c.h.b16 %v273
    %v318 = vunpack.c.l.b16 %v274
    %v319 = vunpack.c.h.b16 %v274
    %v320 = vunpack.c.l.b16 %v275
    %v321 = vunpack.c.h.b16 %v275
    %v322 = vunpack.c.l.b16 %v276
    %v323 = vunpack.c.h.b16 %v276
    %v324 = vunpack.c.l.b16 %v277
    %v325 = vunpack.c.h.b16 %v277
    %v326 = vpack.c.b16 %v296, %v294
    %v327 = vpack.c.b16 %v297, %v295
    %v328 = vpack.c.b16 %v300, %v298
    %v329 = vpack.c.b16 %v301, %v299
    %v330 = vpack.c.b16 %v304, %v302
    %v331 = vpack.c.b16 %v305, %v303
    %v332 = vpack.c.b16 %v308, %v306
    %v333 = vpack.c.b16 %v309, %v307
    %v334 = vpack.c.b16 %v312, %v310
    %v335 = vpack.c.b16 %v313, %v311
    %v336 = vpack.c.b16 %v316, %v314
    %v337 = vpack.c.b16 %v317, %v315
    %v338 = vpack.c.b16 %v320, %v318
    %v339 = vpack.c.b16 %v321, %v319
    %v340 = vpack.c.b16 %v324, %v322
    %v341 = vpack.c.b16 %v325, %v323
    %358 = vmatprep.subr.bf16.mxu0 %v341
    %359 = vmatpush1.bf16.msra.mxu0 %v340
    %360 = vmatprep.subr.bf16.mxu0 %v339
    %361 = vmatpush1.bf16.msra.mxu0 %v338
    %362 = vmatprep.subr.bf16.mxu0 %v337
    %363 = vmatpush1.bf16.msra.mxu0 %v336
    %364 = vmatprep.subr.bf16.mxu0 %v335
    %365 = vmatpush1.bf16.msra.mxu0 %v334
    %366 = vmatprep.subr.bf16.mxu0 %v333
    %367 = vmatpush1.bf16.msra.mxu0 %v332
    %368 = vmatprep.subr.bf16.mxu0 %v331
    %369 = vmatpush1.bf16.msra.mxu0 %v330
    %370 = vmatprep.subr.bf16.mxu0 %v329
    %371 = vmatpush1.bf16.msra.mxu0 %v328
    %372 = vmatprep.subr.bf16.mxu0 %v327
    %373 = vmatpush1.bf16.msra.mxu0 %v326
    %374 = vmatprep.subr.bf16.mxu0 0
    %375 = vmatpush2.bf16.msra.mxu0 0
    %376 = vmatprep.subr.bf16.mxu0 0
    %377 = vmatpush2.bf16.msra.mxu0 0
    %378 = vmatprep.subr.bf16.mxu0 0
    %379 = vmatpush2.bf16.msra.mxu0 0
    %380 = vmatprep.subr.bf16.mxu0 0
    %381 = vmatpush2.bf16.msra.mxu0 0
    %382 = vmatprep.subr.bf16.mxu0 0
    %383 = vmatpush2.bf16.msra.mxu0 0
    %384 = vmatprep.subr.bf16.mxu0 0
    %385 = vmatpush2.bf16.msra.mxu0 0
    %386 = vmatprep.subr.bf16.mxu0 0
    %387 = vmatpush2.bf16.msra.mxu0 0
    %388 = vmatprep.subr.bf16.mxu0 0
    %389 = vmatpush2.bf16.msra.mxu0 0
    %390 = vmatprep.mubr.bf16.mxu0 0
    %391 = vmatmul.mubr.bf16.gmra.mxu0 0
    %v392 = vpop.f32.mrf.mxu0
    %v393 = vadd.f32 0.0, %v392
    %v394 = vpop.f32.mrf.mxu0
    %v395 = vadd.f32 0.0, %v394
    %v396 = vpop.f32.mrf.mxu0
    %v397 = vpop.f32.mrf.mxu0
    %398 = vdwg.mxu0
    %v399 = vadd.f32 %v109, %v393
    %v400 = vadd.f32 %v110, %v395
    %v401 = vtanh.pop %v399
    %v402 = vxor.u32 %v400, 2147483648
    %v403 = vmul.f32 %v402, 1.442695
    %v404 = vpow.pop %v403
    %v405 = vadd.f32 %v404, 1.0
    %v406 = vrcp.pop %v405
    %v407 = vmul.f32 1.0, %v406
    %v408 = vmul.f32 %v261, 0.0
    %v409 = vmul.f32 %v255, %v401
    %v410 = vadd.f32 %v408, %v409
    %v411 = vtanh.pop %v410
    %v412 = vmul.f32 %v407, %v411
    %s413 = scalar_lea.vmem %s0, 8
    %v414 = vld [vmem:[%s413] sm:$0xff]
    %416 = vset.pattern.permute.xlu0 0
    %417 = vperm.xlu0 %416, %v414
    %v418 = vpop.permute.xlu0 %417
    %v420 = vmul.f32 %v418, %v64
    %v421 = vmul.f32 %v418, %v68
    %v422 = vmul.f32 %v418, %v72
    %v423 = vmul.f32 %v418, %v76
    %v424 = vadd.f32 %v420, %v90
    %v425 = vadd.f32 %v421, %v94
    %v426 = vadd.f32 %v422, %v98
    %v427 = vadd.f32 %v423, %v102
    %v428 = vpack.c.bf16 %v412, %v412
    %429 = vmatprep.subr.bf16.mxu0 %v190
    %430 = vmatpush1.bf16.msra.mxu0 %v189
    %431 = vmatprep.subr.bf16.mxu0 %v188
    %432 = vmatpush1.bf16.msra.mxu0 %v187
    %433 = vmatprep.subr.bf16.mxu0 %v186
    %434 = vmatpush1.bf16.msra.mxu0 %v185
    %435 = vmatprep.subr.bf16.mxu0 %v184
    %436 = vmatpush1.bf16.msra.mxu0 %v183
    %437 = vmatprep.subr.bf16.mxu0 %v182
    %438 = vmatpush1.bf16.msra.mxu0 %v181
    %439 = vmatprep.subr.bf16.mxu0 %v180
    %440 = vmatpush1.bf16.msra.mxu0 %v179
    %441 = vmatprep.subr.bf16.mxu0 %v178
    %442 = vmatpush1.bf16.msra.mxu0 %v177
    %443 = vmatprep.subr.bf16.mxu0 %v176
    %444 = vmatpush1.bf16.msra.mxu0 %v175
    %445 = vmatprep.subr.bf16.mxu0 0
    %446 = vmatpush2.bf16.msra.mxu0 0
    %447 = vmatprep.subr.bf16.mxu0 0
    %448 = vmatpush2.bf16.msra.mxu0 0
    %449 = vmatprep.subr.bf16.mxu0 0
    %450 = vmatpush2.bf16.msra.mxu0 0
    %451 = vmatprep.subr.bf16.mxu0 0
    %452 = vmatpush2.bf16.msra.mxu0 0
    %453 = vmatprep.subr.bf16.mxu0 0
    %454 = vmatpush2.bf16.msra.mxu0 0
    %455 = vmatprep.subr.bf16.mxu0 0
    %456 = vmatpush2.bf16.msra.mxu0 0
    %457 = vmatprep.subr.bf16.mxu0 0
    %458 = vmatpush2.bf16.msra.mxu0 0
    %459 = vmatprep.subr.bf16.mxu0 0
    %460 = vmatpush2.bf16.msra.mxu0 0
    %461 = vmatprep.mubr.bf16.mxu0 0
    %462 = vmatmul.mubr.bf16.gmra.mxu0 %v428
    %v463 = vpop.f32.mrf.mxu0
    %v464 = vadd.f32 0.0, %v463
    %v465 = vpop.f32.mrf.mxu0
    %v466 = vadd.f32 0.0, %v465
    %v467 = vpop.f32.mrf.mxu0
    %v468 = vpop.f32.mrf.mxu0
    %469 = vdwg.mxu0
    %v470 = vadd.f32 %v424, %v464
    %v471 = vadd.f32 %v425, %v466
    %v472 = vxor.u32 %v470, 2147483648
    %v473 = vmul.f32 %v472, 1.442695
    %v474 = vpow.pop %v473
    %v475 = vadd.f32 %v474, 1.0
    %v476 = vrcp.pop %v475
    %v477 = vmul.f32 1.0, %v476
    %v478 = vxor.u32 %v471, 2147483648
    %v479 = vmul.f32 %v478, 1.442695
    %v480 = vpow.pop %v479
    %v481 = vadd.f32 %v480, 1.0
    %v482 = vrcp.pop %v481
    %v483 = vmul.f32 1.0, %v482
    %484 = vmatprep.subr.bf16.mxu0 %v341
    %485 = vmatpush1.bf16.msra.mxu0 %v340
    %486 = vmatprep.subr.bf16.mxu0 %v339
    %487 = vmatpush1.bf16.msra.mxu0 %v338
    %488 = vmatprep.subr.bf16.mxu0 %v337
    %489 = vmatpush1.bf16.msra.mxu0 %v336
    %490 = vmatprep.subr.bf16.mxu0 %v335
    %491 = vmatpush1.bf16.msra.mxu0 %v334
    %492 = vmatprep.subr.bf16.mxu0 %v333
    %493 = vmatpush1.bf16.msra.mxu0 %v332
    %494 = vmatprep.subr.bf16.mxu0 %v331
    %495 = vmatpush1.bf16.msra.mxu0 %v330
    %496 = vmatprep.subr.bf16.mxu0 %v329
    %497 = vmatpush1.bf16.msra.mxu0 %v328
    %498 = vmatprep.subr.bf16.mxu0 %v327
    %499 = vmatpush1.bf16.msra.mxu0 %v326
    %500 = vmatprep.subr.bf16.mxu0 0
    %501 = vmatpush2.bf16.msra.mxu0 0
    %502 = vmatprep.subr.bf16.mxu0 0
    %503 = vmatpush2.bf16.msra.mxu0 0
    %504 = vmatprep.subr.bf16.mxu0 0
    %505 = vmatpush2.bf16.msra.mxu0 0
    %506 = vmatprep.subr.bf16.mxu0 0
    %507 = vmatpush2.bf16.msra.mxu0 0
    %508 = vmatprep.subr.bf16.mxu0 0
    %509 = vmatpush2.bf16.msra.mxu0 0
    %510 = vmatprep.subr.bf16.mxu0 0
    %511 = vmatpush2.bf16.msra.mxu0 0
    %512 = vmatprep.subr.bf16.mxu0 0
    %513 = vmatpush2.bf16.msra.mxu0 0
    %514 = vmatprep.subr.bf16.mxu0 0
    %515 = vmatpush2.bf16.msra.mxu0 0
    %516 = vmatprep.mubr.bf16.mxu0 0
    %517 = vmatmul.mubr.bf16.gmra.mxu0 %v428
    %v518 = vpop.f32.mrf.mxu0
    %v519 = vadd.f32 0.0, %v518
    %v520 = vpop.f32.mrf.mxu0
    %v521 = vadd.f32 0.0, %v520
    %v522 = vpop.f32.mrf.mxu0
    %v523 = vpop.f32.mrf.mxu0
    %524 = vdwg.mxu0
    %v525 = vadd.f32 %v426, %v519
    %v526 = vadd.f32 %v427, %v521
    %v527 = vtanh.pop %v525
    %v528 = vxor.u32 %v526, 2147483648
    %v529 = vmul.f32 %v528, 1.442695
    %v530 = vpow.pop %v529
    %v531 = vadd.f32 %v530, 1.0
    %v532 = vrcp.pop %v531
    %v533 = vmul.f32 1.0, %v532
    %v534 = vmul.f32 %v483, %v410
    %v535 = vmul.f32 %v477, %v527
    %v536 = vadd.f32 %v534, %v535
    %v537 = vtanh.pop %v536
    %v538 = vmul.f32 %v533, %v537
    %s539 = scalar_lea.vmem %s0, 16
    %v540 = vld [vmem:[%s539] sm:$0xff]
    %542 = vset.pattern.permute.xlu0 0
    %543 = vperm.xlu0 %542, %v540
    %v544 = vpop.permute.xlu0 %543
    %v546 = vmul.f32 %v544, %v64
    %v547 = vmul.f32 %v544, %v68
    %v548 = vmul.f32 %v544, %v72
    %v549 = vmul.f32 %v544, %v76
    %v550 = vadd.f32 %v546, %v90
    %v551 = vadd.f32 %v547, %v94
    %v552 = vadd.f32 %v548, %v98
    %v553 = vadd.f32 %v549, %v102
    %v554 = vpack.c.bf16 %v538, %v538
    %555 = vmatprep.subr.bf16.mxu0 %v190
    %556 = vmatpush1.bf16.msra.mxu0 %v189
    %557 = vmatprep.subr.bf16.mxu0 %v188
    %558 = vmatpush1.bf16.msra.mxu0 %v187
    %559 = vmatprep.subr.bf16.mxu0 %v186
    %560 = vmatpush1.bf16.msra.mxu0 %v185
    %561 = vmatprep.subr.bf16.mxu0 %v184
    %562 = vmatpush1.bf16.msra.mxu0 %v183
    %563 = vmatprep.subr.bf16.mxu0 %v182
    %564 = vmatpush1.bf16.msra.mxu0 %v181
    %565 = vmatprep.subr.bf16.mxu0 %v180
    %566 = vmatpush1.bf16.msra.mxu0 %v179
    %567 = vmatprep.subr.bf16.mxu0 %v178
    %568 = vmatpush1.bf16.msra.mxu0 %v177
    %569 = vmatprep.subr.bf16.mxu0 %v176
    %570 = vmatpush1.bf16.msra.mxu0 %v175
    %571 = vmatprep.subr.bf16.mxu0 0
    %572 = vmatpush2.bf16.msra.mxu0 0
    %573 = vmatprep.subr.bf16.mxu0 0
    %574 = vmatpush2.bf16.msra.mxu0 0
    %575 = vmatprep.subr.bf16.mxu0 0
    %576 = vmatpush2.bf16.msra.mxu0 0
    %577 = vmatprep.subr.bf16.mxu0 0
    %578 = vmatpush2.bf16.msra.mxu0 0
    %579 = vmatprep.subr.bf16.mxu0 0
    %580 = vmatpush2.bf16.msra.mxu0 0
    %581 = vmatprep.subr.bf16.mxu0 0
    %582 = vmatpush2.bf16.msra.mxu0 0
    %583 = vmatprep.subr.bf16.mxu0 0
    %584 = vmatpush2.bf16.msra.mxu0 0
    %585 = vmatprep.subr.bf16.mxu0 0
    %586 = vmatpush2.bf16.msra.mxu0 0
    %587 = vmatprep.mubr.bf16.mxu0 0
    %588 = vmatmul.mubr.bf16.gmra.mxu0 %v554
    %v589 = vpop.f32.mrf.mxu0
    %v590 = vadd.f32 0.0, %v589
    %v591 = vpop.f32.mrf.mxu0
    %v592 = vadd.f32 0.0, %v591
    %v593 = vpop.f32.mrf.mxu0
    %v594 = vpop.f32.mrf.mxu0
    %595 = vdwg.mxu0
    %v596 = vadd.f32 %v550, %v590
    %v597 = vadd.f32 %v551, %v592
    %v598 = vxor.u32 %v596, 2147483648
    %v599 = vmul.f32 %v598, 1.442695
    %v600 = vpow.pop %v599
    %v601 = vadd.f32 %v600, 1.0
    %v602 = vrcp.pop %v601
    %v603 = vmul.f32 1.0, %v602
    %v604 = vxor.u32 %v597, 2147483648
    %v605 = vmul.f32 %v604, 1.442695
    %v606 = vpow.pop %v605
    %v607 = vadd.f32 %v606, 1.0
    %v608 = vrcp.pop %v607
    %v609 = vmul.f32 1.0, %v608
    %610 = vmatprep.subr.bf16.mxu0 %v341
    %611 = vmatpush1.bf16.msra.mxu0 %v340
    %612 = vmatprep.subr.bf16.mxu0 %v339
    %613 = vmatpush1.bf16.msra.mxu0 %v338
    %614 = vmatprep.subr.bf16.mxu0 %v337
    %615 = vmatpush1.bf16.msra.mxu0 %v336
    %616 = vmatprep.subr.bf16.mxu0 %v335
    %617 = vmatpush1.bf16.msra.mxu0 %v334
    %618 = vmatprep.subr.bf16.mxu0 %v333
    %619 = vmatpush1.bf16.msra.mxu0 %v332
    %620 = vmatprep.subr.bf16.mxu0 %v331
    %621 = vmatpush1.bf16.msra.mxu0 %v330
    %622 = vmatprep.subr.bf16.mxu0 %v329
    %623 = vmatpush1.bf16.msra.mxu0 %v328
    %624 = vmatprep.subr.bf16.mxu0 %v327
    %625 = vmatpush1.bf16.msra.mxu0 %v326
    %626 = vmatprep.subr.bf16.mxu0 0
    %627 = vmatpush2.bf16.msra.mxu0 0
    %628 = vmatprep.subr.bf16.mxu0 0
    %629 = vmatpush2.bf16.msra.mxu0 0
    %630 = vmatprep.subr.bf16.mxu0 0
    %631 = vmatpush2.bf16.msra.mxu0 0
    %632 = vmatprep.subr.bf16.mxu0 0
    %633 = vmatpush2.bf16.msra.mxu0 0
    %634 = vmatprep.subr.bf16.mxu0 0
    %635 = vmatpush2.bf16.msra.mxu0 0
    %636 = vmatprep.subr.bf16.mxu0 0
    %637 = vmatpush2.bf16.msra.mxu0 0
    %638 = vmatprep.subr.bf16.mxu0 0
    %639 = vmatpush2.bf16.msra.mxu0 0
    %640 = vmatprep.subr.bf16.mxu0 0
    %641 = vmatpush2.bf16.msra.mxu0 0
    %642 = vmatprep.mubr.bf16.mxu0 0
    %643 = vmatmul.mubr.bf16.gmra.mxu0 %v554
    %v644 = vpop.f32.mrf.mxu0
    %v645 = vadd.f32 0.0, %v644
    %v646 = vpop.f32.mrf.mxu0
    %v647 = vadd.f32 0.0, %v646
    %v648 = vpop.f32.mrf.mxu0
    %v649 = vpop.f32.mrf.mxu0
    %650 = vdwg.mxu0
    %v651 = vadd.f32 %v552, %v645
    %v652 = vadd.f32 %v553, %v647
    %v653 = vtanh.pop %v651
    %v654 = vxor.u32 %v652, 2147483648
    %v655 = vmul.f32 %v654, 1.442695
    %v656 = vpow.pop %v655
    %v657 = vadd.f32 %v656, 1.0
    %v658 = vrcp.pop %v657
    %v659 = vmul.f32 1.0, %v658
    %v660 = vmul.f32 %v609, %v536
    %v661 = vmul.f32 %v603, %v653
    %v662 = vadd.f32 %v660, %v661
    %v663 = vtanh.pop %v662
    %v664 = vmul.f32 %v659, %v663
    %s665 = scalar_lea.vmem %s0, 24
    %v666 = vld [vmem:[%s665] sm:$0xff]
    %668 = vset.pattern.permute.xlu0 0
    %669 = vperm.xlu0 %668, %v666
    %v670 = vpop.permute.xlu0 %669
    %v672 = vmul.f32 %v670, %v64
    %v673 = vmul.f32 %v670, %v68
    %v674 = vmul.f32 %v670, %v72
    %v675 = vmul.f32 %v670, %v76
    %v676 = vadd.f32 %v672, %v90
    %v677 = vadd.f32 %v673, %v94
    %v678 = vadd.f32 %v674, %v98
    %v679 = vadd.f32 %v675, %v102
    %v680 = vpack.c.bf16 %v664, %v664
    %681 = vmatprep.subr.bf16.mxu0 %v190
    %682 = vmatpush1.bf16.msra.mxu0 %v189
    %683 = vmatprep.subr.bf16.mxu0 %v188
    %684 = vmatpush1.bf16.msra.mxu0 %v187
    %685 = vmatprep.subr.bf16.mxu0 %v186
    %686 = vmatpush1.bf16.msra.mxu0 %v185
    %687 = vmatprep.subr.bf16.mxu0 %v184
    %688 = vmatpush1.bf16.msra.mxu0 %v183
    %689 = vmatprep.subr.bf16.mxu0 %v182
    %690 = vmatpush1.bf16.msra.mxu0 %v181
    %691 = vmatprep.subr.bf16.mxu0 %v180
    %692 = vmatpush1.bf16.msra.mxu0 %v179
    %693 = vmatprep.subr.bf16.mxu0 %v178
    %694 = vmatpush1.bf16.msra.mxu0 %v177
    %695 = vmatprep.subr.bf16.mxu0 %v176
    %696 = vmatpush1.bf16.msra.mxu0 %v175
    %697 = vmatprep.subr.bf16.mxu0 0
    %698 = vmatpush2.bf16.msra.mxu0 0
    %699 = vmatprep.subr.bf16.mxu0 0
    %700 = vmatpush2.bf16.msra.mxu0 0
    %701 = vmatprep.subr.bf16.mxu0 0
    %702 = vmatpush2.bf16.msra.mxu0 0
    %703 = vmatprep.subr.bf16.mxu0 0
    %704 = vmatpush2.bf16.msra.mxu0 0
    %705 = vmatprep.subr.bf16.mxu0 0
    %706 = vmatpush2.bf16.msra.mxu0 0
    %707 = vmatprep.subr.bf16.mxu0 0
    %708 = vmatpush2.bf16.msra.mxu0 0
    %709 = vmatprep.subr.bf16.mxu0 0
    %710 = vmatpush2.bf16.msra.mxu0 0
    %711 = vmatprep.subr.bf16.mxu0 0
    %712 = vmatpush2.bf16.msra.mxu0 0
    %713 = vmatprep.mubr.bf16.mxu0 0
    %714 = vmatmul.mubr.bf16.gmra.mxu0 %v680
    %v715 = vpop.f32.mrf.mxu0
    %v716 = vadd.f32 0.0, %v715
    %v717 = vpop.f32.mrf.mxu0
    %v718 = vadd.f32 0.0, %v717
    %v719 = vpop.f32.mrf.mxu0
    %v720 = vpop.f32.mrf.mxu0
    %721 = vdwg.mxu0
    %v722 = vadd.f32 %v676, %v716
    %v723 = vadd.f32 %v677, %v718
    %v724 = vxor.u32 %v722, 2147483648
    %v725 = vmul.f32 %v724, 1.442695
    %v726 = vpow.pop %v725
    %v727 = vadd.f32 %v726, 1.0
    %v728 = vrcp.pop %v727
    %v729 = vmul.f32 1.0, %v728
    %v730 = vxor.u32 %v723, 2147483648
    %v731 = vmul.f32 %v730, 1.442695
    %v732 = vpow.pop %v731
    %v733 = vadd.f32 %v732, 1.0
    %v734 = vrcp.pop %v733
    %v735 = vmul.f32 1.0, %v734
    %736 = vmatprep.subr.bf16.mxu0 %v341
    %737 = vmatpush1.bf16.msra.mxu0 %v340
    %738 = vmatprep.subr.bf16.mxu0 %v339
    %739 = vmatpush1.bf16.msra.mxu0 %v338
    %740 = vmatprep.subr.bf16.mxu0 %v337
    %741 = vmatpush1.bf16.msra.mxu0 %v336
    %742 = vmatprep.subr.bf16.mxu0 %v335
    %743 = vmatpush1.bf16.msra.mxu0 %v334
    %744 = vmatprep.subr.bf16.mxu0 %v333
    %745 = vmatpush1.bf16.msra.mxu0 %v332
    %746 = vmatprep.subr.bf16.mxu0 %v331
    %747 = vmatpush1.bf16.msra.mxu0 %v330
    %748 = vmatprep.subr.bf16.mxu0 %v329
    %749 = vmatpush1.bf16.msra.mxu0 %v328
    %750 = vmatprep.subr.bf16.mxu0 %v327
    %751 = vmatpush1.bf16.msra.mxu0 %v326
    %752 = vmatprep.subr.bf16.mxu0 0
    %753 = vmatpush2.bf16.msra.mxu0 0
    %754 = vmatprep.subr.bf16.mxu0 0
    %755 = vmatpush2.bf16.msra.mxu0 0
    %756 = vmatprep.subr.bf16.mxu0 0
    %757 = vmatpush2.bf16.msra.mxu0 0
    %758 = vmatprep.subr.bf16.mxu0 0
    %759 = vmatpush2.bf16.msra.mxu0 0
    %760 = vmatprep.subr.bf16.mxu0 0
    %761 = vmatpush2.bf16.msra.mxu0 0
    %762 = vmatprep.subr.bf16.mxu0 0
    %763 = vmatpush2.bf16.msra.mxu0 0
    %764 = vmatprep.subr.bf16.mxu0 0
    %765 = vmatpush2.bf16.msra.mxu0 0
    %766 = vmatprep.subr.bf16.mxu0 0
    %767 = vmatpush2.bf16.msra.mxu0 0
    %768 = vmatprep.mubr.bf16.mxu0 0
    %769 = vmatmul.mubr.bf16.gmra.mxu0 %v680
    %v770 = vpop.f32.mrf.mxu0
    %v771 = vadd.f32 0.0, %v770
    %v772 = vpop.f32.mrf.mxu0
    %v773 = vadd.f32 0.0, %v772
    %v774 = vpop.f32.mrf.mxu0
    %v775 = vpop.f32.mrf.mxu0
    %776 = vdwg.mxu0
    %v777 = vadd.f32 %v678, %v771
    %v778 = vadd.f32 %v679, %v773
    %v779 = vtanh.pop %v777
    %v780 = vxor.u32 %v778, 2147483648
    %v781 = vmul.f32 %v780, 1.442695
    %v782 = vpow.pop %v781
    %v783 = vadd.f32 %v782, 1.0
    %v784 = vrcp.pop %v783
    %v785 = vmul.f32 1.0, %v784
    %v786 = vmul.f32 %v735, %v662
    %v787 = vmul.f32 %v729, %v779
    %v788 = vadd.f32 %v786, %v787
    %v789 = vtanh.pop %v788
    %v790 = vmul.f32 %v785, %v789
    %s791 = scalar_lea.vmem %s0, 32
    %v792 = vld [vmem:[%s791] sm:$0xff]
    %794 = vset.pattern.permute.xlu0 0
    %795 = vperm.xlu0 %794, %v792
    %v796 = vpop.permute.xlu0 %795
    %v798 = vmul.f32 %v796, %v64
    %v799 = vmul.f32 %v796, %v68
    %v800 = vmul.f32 %v796, %v72
    %v801 = vmul.f32 %v796, %v76
    %v802 = vadd.f32 %v798, %v90
    %v803 = vadd.f32 %v799, %v94
    %v804 = vadd.f32 %v800, %v98
    %v805 = vadd.f32 %v801, %v102
    %v806 = vpack.c.bf16 %v790, %v790
    %807 = vmatprep.subr.bf16.mxu0 %v190
    %808 = vmatpush1.bf16.msra.mxu0 %v189
    %809 = vmatprep.subr.bf16.mxu0 %v188
    %810 = vmatpush1.bf16.msra.mxu0 %v187
    %811 = vmatprep.subr.bf16.mxu0 %v186
    %812 = vmatpush1.bf16.msra.mxu0 %v185
    %813 = vmatprep.subr.bf16.mxu0 %v184
    %814 = vmatpush1.bf16.msra.mxu0 %v183
    %815 = vmatprep.subr.bf16.mxu0 %v182
    %816 = vmatpush1.bf16.msra.mxu0 %v181
    %817 = vmatprep.subr.bf16.mxu0 %v180
    %818 = vmatpush1.bf16.msra.mxu0 %v179
    %819 = vmatprep.subr.bf16.mxu0 %v178
    %820 = vmatpush1.bf16.msra.mxu0 %v177
    %821 = vmatprep.subr.bf16.mxu0 %v176
    %822 = vmatpush1.bf16.msra.mxu0 %v175
    %823 = vmatprep.subr.bf16.mxu0 0
    %824 = vmatpush2.bf16.msra.mxu0 0
    %825 = vmatprep.subr.bf16.mxu0 0
    %826 = vmatpush2.bf16.msra.mxu0 0
    %827 = vmatprep.subr.bf16.mxu0 0
    %828 = vmatpush2.bf16.msra.mxu0 0
    %829 = vmatprep.subr.bf16.mxu0 0
    %830 = vmatpush2.bf16.msra.mxu0 0
    %831 = vmatprep.subr.bf16.mxu0 0
    %832 = vmatpush2.bf16.msra.mxu0 0
    %833 = vmatprep.subr.bf16.mxu0 0
    %834 = vmatpush2.bf16.msra.mxu0 0
    %835 = vmatprep.subr.bf16.mxu0 0
    %836 = vmatpush2.bf16.msra.mxu0 0
    %837 = vmatprep.subr.bf16.mxu0 0
    %838 = vmatpush2.bf16.msra.mxu0 0
    %839 = vmatprep.mubr.bf16.mxu0 0
    %840 = vmatmul.mubr.bf16.gmra.mxu0 %v806
    %v841 = vpop.f32.mrf.mxu0
    %v842 = vadd.f32 0.0, %v841
    %v843 = vpop.f32.mrf.mxu0
    %v844 = vadd.f32 0.0, %v843
    %v845 = vpop.f32.mrf.mxu0
    %v846 = vpop.f32.mrf.mxu0
    %847 = vdwg.mxu0
    %v848 = vadd.f32 %v802, %v842
    %v849 = vadd.f32 %v803, %v844
    %v850 = vxor.u32 %v848, 2147483648
    %v851 = vmul.f32 %v850, 1.442695
    %v852 = vpow.pop %v851
    %v853 = vadd.f32 %v852, 1.0
    %v854 = vrcp.pop %v853
    %v855 = vmul.f32 1.0, %v854
    %v856 = vxor.u32 %v849, 2147483648
    %v857 = vmul.f32 %v856, 1.442695
    %v858 = vpow.pop %v857
    %v859 = vadd.f32 %v858, 1.0
    %v860 = vrcp.pop %v859
    %v861 = vmul.f32 1.0, %v860
    %862 = vmatprep.subr.bf16.mxu0 %v341
    %863 = vmatpush1.bf16.msra.mxu0 %v340
    %864 = vmatprep.subr.bf16.mxu0 %v339
    %865 = vmatpush1.bf16.msra.mxu0 %v338
    %866 = vmatprep.subr.bf16.mxu0 %v337
    %867 = vmatpush1.bf16.msra.mxu0 %v336
    %868 = vmatprep.subr.bf16.mxu0 %v335
    %869 = vmatpush1.bf16.msra.mxu0 %v334
    %870 = vmatprep.subr.bf16.mxu0 %v333
    %871 = vmatpush1.bf16.msra.mxu0 %v332
    %872 = vmatprep.subr.bf16.mxu0 %v331
    %873 = vmatpush1.bf16.msra.mxu0 %v330
    %874 = vmatprep.subr.bf16.mxu0 %v329
    %875 = vmatpush1.bf16.msra.mxu0 %v328
    %876 = vmatprep.subr.bf16.mxu0 %v327
    %877 = vmatpush1.bf16.msra.mxu0 %v326
    %878 = vmatprep.subr.bf16.mxu0 0
    %879 = vmatpush2.bf16.msra.mxu0 0
    %880 = vmatprep.subr.bf16.mxu0 0
    %881 = vmatpush2.bf16.msra.mxu0 0
    %882 = vmatprep.subr.bf16.mxu0 0
    %883 = vmatpush2.bf16.msra.mxu0 0
    %884 = vmatprep.subr.bf16.mxu0 0
    %885 = vmatpush2.bf16.msra.mxu0 0
    %886 = vmatprep.subr.bf16.mxu0 0
    %887 = vmatpush2.bf16.msra.mxu0 0
    %888 = vmatprep.subr.bf16.mxu0 0
    %889 = vmatpush2.bf16.msra.mxu0 0
    %890 = vmatprep.subr.bf16.mxu0 0
    %891 = vmatpush2.bf16.msra.mxu0 0
    %892 = vmatprep.subr.bf16.mxu0 0
    %893 = vmatpush2.bf16.msra.mxu0 0
    %894 = vmatprep.mubr.bf16.mxu0 0
    %895 = vmatmul.mubr.bf16.gmra.mxu0 %v806
    %v896 = vpop.f32.mrf.mxu0
    %v897 = vadd.f32 0.0, %v896
    %v898 = vpop.f32.mrf.mxu0
    %v899 = vadd.f32 0.0, %v898
    %v900 = vpop.f32.mrf.mxu0
    %v901 = vpop.f32.mrf.mxu0
    %902 = vdwg.mxu0
    %v903 = vadd.f32 %v804, %v897
    %v904 = vadd.f32 %v805, %v899
    %v905 = vtanh.pop %v903
    %v906 = vxor.u32 %v904, 2147483648
    %v907 = vmul.f32 %v906, 1.442695
    %v908 = vpow.pop %v907
    %v909 = vadd.f32 %v908, 1.0
    %v910 = vrcp.pop %v909
    %v911 = vmul.f32 1.0, %v910
    %v912 = vmul.f32 %v861, %v788
    %v913 = vmul.f32 %v855, %v905
    %v914 = vadd.f32 %v912, %v913
    %v915 = vtanh.pop %v914
    %v916 = vmul.f32 %v911, %v915
    %s917 = scalar_lea.vmem %s0, 40
    %v918 = vld [vmem:[%s917] sm:$0xff]
    %920 = vset.pattern.permute.xlu0 0
    %921 = vperm.xlu0 %920, %v918
    %v922 = vpop.permute.xlu0 %921
    %v924 = vmul.f32 %v922, %v64
    %v925 = vmul.f32 %v922, %v68
    %v926 = vmul.f32 %v922, %v72
    %v927 = vmul.f32 %v922, %v76
    %v928 = vadd.f32 %v924, %v90
    %v929 = vadd.f32 %v925, %v94
    %v930 = vadd.f32 %v926, %v98
    %v931 = vadd.f32 %v927, %v102
    %v932 = vpack.c.bf16 %v916, %v916
    %933 = vmatprep.subr.bf16.mxu0 %v190
    %934 = vmatpush1.bf16.msra.mxu0 %v189
    %935 = vmatprep.subr.bf16.mxu0 %v188
    %936 = vmatpush1.bf16.msra.mxu0 %v187
    %937 = vmatprep.subr.bf16.mxu0 %v186
    %938 = vmatpush1.bf16.msra.mxu0 %v185
    %939 = vmatprep.subr.bf16.mxu0 %v184
    %940 = vmatpush1.bf16.msra.mxu0 %v183
    %941 = vmatprep.subr.bf16.mxu0 %v182
    %942 = vmatpush1.bf16.msra.mxu0 %v181
    %943 = vmatprep.subr.bf16.mxu0 %v180
    %944 = vmatpush1.bf16.msra.mxu0 %v179
    %945 = vmatprep.subr.bf16.mxu0 %v178
    %946 = vmatpush1.bf16.msra.mxu0 %v177
    %947 = vmatprep.subr.bf16.mxu0 %v176
    %948 = vmatpush1.bf16.msra.mxu0 %v175
    %949 = vmatprep.subr.bf16.mxu0 0
    %950 = vmatpush2.bf16.msra.mxu0 0
    %951 = vmatprep.subr.bf16.mxu0 0
    %952 = vmatpush2.bf16.msra.mxu0 0
    %953 = vmatprep.subr.bf16.mxu0 0
    %954 = vmatpush2.bf16.msra.mxu0 0
    %955 = vmatprep.subr.bf16.mxu0 0
    %956 = vmatpush2.bf16.msra.mxu0 0
    %957 = vmatprep.subr.bf16.mxu0 0
    %958 = vmatpush2.bf16.msra.mxu0 0
    %959 = vmatprep.subr.bf16.mxu0 0
    %960 = vmatpush2.bf16.msra.mxu0 0
    %961 = vmatprep.subr.bf16.mxu0 0
    %962 = vmatpush2.bf16.msra.mxu0 0
    %963 = vmatprep.subr.bf16.mxu0 0
    %964 = vmatpush2.bf16.msra.mxu0 0
    %965 = vmatprep.mubr.bf16.mxu0 0
    %966 = vmatmul.mubr.bf16.gmra.mxu0 %v932
    %v967 = vpop.f32.mrf.mxu0
    %v968 = vadd.f32 0.0, %v967
    %v969 = vpop.f32.mrf.mxu0
    %v970 = vadd.f32 0.0, %v969
    %v971 = vpop.f32.mrf.mxu0
    %v972 = vpop.f32.mrf.mxu0
    %973 = vdwg.mxu0
    %v974 = vadd.f32 %v928, %v968
    %v975 = vadd.f32 %v929, %v970
    %v976 = vxor.u32 %v974, 2147483648
    %v977 = vmul.f32 %v976, 1.442695
    %v978 = vpow.pop %v977
    %v979 = vadd.f32 %v978, 1.0
    %v980 = vrcp.pop %v979
    %v981 = vmul.f32 1.0, %v980
    %v982 = vxor.u32 %v975, 2147483648
    %v983 = vmul.f32 %v982, 1.442695
    %v984 = vpow.pop %v983
    %v985 = vadd.f32 %v984, 1.0
    %v986 = vrcp.pop %v985
    %v987 = vmul.f32 1.0, %v986
    %988 = vmatprep.subr.bf16.mxu0 %v341
    %989 = vmatpush1.bf16.msra.mxu0 %v340
    %990 = vmatprep.subr.bf16.mxu0 %v339
    %991 = vmatpush1.bf16.msra.mxu0 %v338
    %992 = vmatprep.subr.bf16.mxu0 %v337
    %993 = vmatpush1.bf16.msra.mxu0 %v336
    %994 = vmatprep.subr.bf16.mxu0 %v335
    %995 = vmatpush1.bf16.msra.mxu0 %v334
    %996 = vmatprep.subr.bf16.mxu0 %v333
    %997 = vmatpush1.bf16.msra.mxu0 %v332
    %998 = vmatprep.subr.bf16.mxu0 %v331
    %999 = vmatpush1.bf16.msra.mxu0 %v330
    %1000 = vmatprep.subr.bf16.mxu0 %v329
    %1001 = vmatpush1.bf16.msra.mxu0 %v328
    %1002 = vmatprep.subr.bf16.mxu0 %v327
    %1003 = vmatpush1.bf16.msra.mxu0 %v326
    %1004 = vmatprep.subr.bf16.mxu0 0
    %1005 = vmatpush2.bf16.msra.mxu0 0
    %1006 = vmatprep.subr.bf16.mxu0 0
    %1007 = vmatpush2.bf16.msra.mxu0 0
    %1008 = vmatprep.subr.bf16.mxu0 0
    %1009 = vmatpush2.bf16.msra.mxu0 0
    %1010 = vmatprep.subr.bf16.mxu0 0
    %1011 = vmatpush2.bf16.msra.mxu0 0
    %1012 = vmatprep.subr.bf16.mxu0 0
    %1013 = vmatpush2.bf16.msra.mxu0 0
    %1014 = vmatprep.subr.bf16.mxu0 0
    %1015 = vmatpush2.bf16.msra.mxu0 0
    %1016 = vmatprep.subr.bf16.mxu0 0
    %1017 = vmatpush2.bf16.msra.mxu0 0
    %1018 = vmatprep.subr.bf16.mxu0 0
    %1019 = vmatpush2.bf16.msra.mxu0 0
    %1020 = vmatprep.mubr.bf16.mxu0 0
    %1021 = vmatmul.mubr.bf16.gmra.mxu0 %v932
    %v1022 = vpop.f32.mrf.mxu0
    %v1023 = vadd.f32 0.0, %v1022
    %v1024 = vpop.f32.mrf.mxu0
    %v1025 = vadd.f32 0.0, %v1024
    %v1026 = vpop.f32.mrf.mxu0
    %v1027 = vpop.f32.mrf.mxu0
    %1028 = vdwg.mxu0
    %v1029 = vadd.f32 %v930, %v1023
    %v1030 = vadd.f32 %v931, %v1025
    %v1031 = vtanh.pop %v1029
    %v1032 = vxor.u32 %v1030, 2147483648
    %v1033 = vmul.f32 %v1032, 1.442695
    %v1034 = vpow.pop %v1033
    %v1035 = vadd.f32 %v1034, 1.0
    %v1036 = vrcp.pop %v1035
    %v1037 = vmul.f32 1.0, %v1036
    %v1038 = vmul.f32 %v987, %v914
    %v1039 = vmul.f32 %v981, %v1031
    %v1040 = vadd.f32 %v1038, %v1039
    %v1041 = vtanh.pop %v1040
    %v1042 = vmul.f32 %v1037, %v1041
    %s1043 = scalar_lea.vmem %s0, 48
    %v1044 = vld [vmem:[%s1043] sm:$0xff]
    %1046 = vset.pattern.permute.xlu0 0
    %1047 = vperm.xlu0 %1046, %v1044
    %v1048 = vpop.permute.xlu0 %1047
    %v1050 = vmul.f32 %v1048, %v64
    %v1051 = vmul.f32 %v1048, %v68
    %v1052 = vmul.f32 %v1048, %v72
    %v1053 = vmul.f32 %v1048, %v76
    %v1054 = vadd.f32 %v1050, %v90
    %v1055 = vadd.f32 %v1051, %v94
    %v1056 = vadd.f32 %v1052, %v98
    %v1057 = vadd.f32 %v1053, %v102
    %v1058 = vpack.c.bf16 %v1042, %v1042
    %1059 = vmatprep.subr.bf16.mxu0 %v190
    %1060 = vmatpush1.bf16.msra.mxu0 %v189
    %1061 = vmatprep.subr.bf16.mxu0 %v188
    %1062 = vmatpush1.bf16.msra.mxu0 %v187
    %1063 = vmatprep.subr.bf16.mxu0 %v186
    %1064 = vmatpush1.bf16.msra.mxu0 %v185
    %1065 = vmatprep.subr.bf16.mxu0 %v184
    %1066 = vmatpush1.bf16.msra.mxu0 %v183
    %1067 = vmatprep.subr.bf16.mxu0 %v182
    %1068 = vmatpush1.bf16.msra.mxu0 %v181
    %1069 = vmatprep.subr.bf16.mxu0 %v180
    %1070 = vmatpush1.bf16.msra.mxu0 %v179
    %1071 = vmatprep.subr.bf16.mxu0 %v178
    %1072 = vmatpush1.bf16.msra.mxu0 %v177
    %1073 = vmatprep.subr.bf16.mxu0 %v176
    %1074 = vmatpush1.bf16.msra.mxu0 %v175
    %1075 = vmatprep.subr.bf16.mxu0 0
    %1076 = vmatpush2.bf16.msra.mxu0 0
    %1077 = vmatprep.subr.bf16.mxu0 0
    %1078 = vmatpush2.bf16.msra.mxu0 0
    %1079 = vmatprep.subr.bf16.mxu0 0
    %1080 = vmatpush2.bf16.msra.mxu0 0
    %1081 = vmatprep.subr.bf16.mxu0 0
    %1082 = vmatpush2.bf16.msra.mxu0 0
    %1083 = vmatprep.subr.bf16.mxu0 0
    %1084 = vmatpush2.bf16.msra.mxu0 0
    %1085 = vmatprep.subr.bf16.mxu0 0
    %1086 = vmatpush2.bf16.msra.mxu0 0
    %1087 = vmatprep.subr.bf16.mxu0 0
    %1088 = vmatpush2.bf16.msra.mxu0 0
    %1089 = vmatprep.subr.bf16.mxu0 0
    %1090 = vmatpush2.bf16.msra.mxu0 0
    %1091 = vmatprep.mubr.bf16.mxu0 0
    %1092 = vmatmul.mubr.bf16.gmra.mxu0 %v1058
    %v1093 = vpop.f32.mrf.mxu0
    %v1094 = vadd.f32 0.0, %v1093
    %v1095 = vpop.f32.mrf.mxu0
    %v1096 = vadd.f32 0.0, %v1095
    %v1097 = vpop.f32.mrf.mxu0
    %v1098 = vpop.f32.mrf.mxu0
    %1099 = vdwg.mxu0
    %v1100 = vadd.f32 %v1054, %v1094
    %v1101 = vadd.f32 %v1055, %v1096
    %v1102 = vxor.u32 %v1100, 2147483648
    %v1103 = vmul.f32 %v1102, 1.442695
    %v1104 = vpow.pop %v1103
    %v1105 = vadd.f32 %v1104, 1.0
    %v1106 = vrcp.pop %v1105
    %v1107 = vmul.f32 1.0, %v1106
    %v1108 = vxor.u32 %v1101, 2147483648
    %v1109 = vmul.f32 %v1108, 1.442695
    %v1110 = vpow.pop %v1109
    %v1111 = vadd.f32 %v1110, 1.0
    %v1112 = vrcp.pop %v1111
    %v1113 = vmul.f32 1.0, %v1112
    %1114 = vmatprep.subr.bf16.mxu0 %v341
    %1115 = vmatpush1.bf16.msra.mxu0 %v340
    %1116 = vmatprep.subr.bf16.mxu0 %v339
    %1117 = vmatpush1.bf16.msra.mxu0 %v338
    %1118 = vmatprep.subr.bf16.mxu0 %v337
    %1119 = vmatpush1.bf16.msra.mxu0 %v336
    %1120 = vmatprep.subr.bf16.mxu0 %v335
    %1121 = vmatpush1.bf16.msra.mxu0 %v334
    %1122 = vmatprep.subr.bf16.mxu0 %v333
    %1123 = vmatpush1.bf16.msra.mxu0 %v332
    %1124 = vmatprep.subr.bf16.mxu0 %v331
    %1125 = vmatpush1.bf16.msra.mxu0 %v330
    %1126 = vmatprep.subr.bf16.mxu0 %v329
    %1127 = vmatpush1.bf16.msra.mxu0 %v328
    %1128 = vmatprep.subr.bf16.mxu0 %v327
    %1129 = vmatpush1.bf16.msra.mxu0 %v326
    %1130 = vmatprep.subr.bf16.mxu0 0
    %1131 = vmatpush2.bf16.msra.mxu0 0
    %1132 = vmatprep.subr.bf16.mxu0 0
    %1133 = vmatpush2.bf16.msra.mxu0 0
    %1134 = vmatprep.subr.bf16.mxu0 0
    %1135 = vmatpush2.bf16.msra.mxu0 0
    %1136 = vmatprep.subr.bf16.mxu0 0
    %1137 = vmatpush2.bf16.msra.mxu0 0
    %1138 = vmatprep.subr.bf16.mxu0 0
    %1139 = vmatpush2.bf16.msra.mxu0 0
    %1140 = vmatprep.subr.bf16.mxu0 0
    %1141 = vmatpush2.bf16.msra.mxu0 0
    %1142 = vmatprep.subr.bf16.mxu0 0
    %1143 = vmatpush2.bf16.msra.mxu0 0
    %1144 = vmatprep.subr.bf16.mxu0 0
    %1145 = vmatpush2.bf16.msra.mxu0 0
    %1146 = vmatprep.mubr.bf16.mxu0 0
    %1147 = vmatmul.mubr.bf16.gmra.mxu0 %v1058
    %v1148 = vpop.f32.mrf.mxu0
    %v1149 = vadd.f32 0.0, %v1148
    %v1150 = vpop.f32.mrf.mxu0
    %v1151 = vadd.f32 0.0, %v1150
    %v1152 = vpop.f32.mrf.mxu0
    %v1153 = vpop.f32.mrf.mxu0
    %1154 = vdwg.mxu0
    %v1155 = vadd.f32 %v1056, %v1149
    %v1156 = vadd.f32 %v1057, %v1151
    %v1157 = vtanh.pop %v1155
    %v1158 = vxor.u32 %v1156, 2147483648
    %v1159 = vmul.f32 %v1158, 1.442695
    %v1160 = vpow.pop %v1159
    %v1161 = vadd.f32 %v1160, 1.0
    %v1162 = vrcp.pop %v1161
    %v1163 = vmul.f32 1.0, %v1162
    %v1164 = vmul.f32 %v1113, %v1040
    %v1165 = vmul.f32 %v1107, %v1157
    %v1166 = vadd.f32 %v1164, %v1165
    %v1167 = vtanh.pop %v1166
    %v1168 = vmul.f32 %v1163, %v1167
    %s1169 = scalar_lea.vmem %s0, 56
    %v1170 = vld [vmem:[%s1169] sm:$0xff]
    %1172 = vset.pattern.permute.xlu0 0
    %1173 = vperm.xlu0 %1172, %v1170
    %v1174 = vpop.permute.xlu0 %1173
    %v1176 = vmul.f32 %v1174, %v64
    %v1177 = vmul.f32 %v1174, %v68
    %v1178 = vmul.f32 %v1174, %v72
    %v1179 = vmul.f32 %v1174, %v76
    %v1180 = vadd.f32 %v1176, %v90
    %v1181 = vadd.f32 %v1177, %v94
    %v1182 = vadd.f32 %v1178, %v98
    %v1183 = vadd.f32 %v1179, %v102
    %v1184 = vpack.c.bf16 %v1168, %v1168
    %1185 = vmatprep.subr.bf16.mxu0 %v190
    %1186 = vmatpush1.bf16.msra.mxu0 %v189
    %1187 = vmatprep.subr.bf16.mxu0 %v188
    %1188 = vmatpush1.bf16.msra.mxu0 %v187
    %1189 = vmatprep.subr.bf16.mxu0 %v186
    %1190 = vmatpush1.bf16.msra.mxu0 %v185
    %1191 = vmatprep.subr.bf16.mxu0 %v184
    %1192 = vmatpush1.bf16.msra.mxu0 %v183
    %1193 = vmatprep.subr.bf16.mxu0 %v182
    %1194 = vmatpush1.bf16.msra.mxu0 %v181
    %1195 = vmatprep.subr.bf16.mxu0 %v180
    %1196 = vmatpush1.bf16.msra.mxu0 %v179
    %1197 = vmatprep.subr.bf16.mxu0 %v178
    %1198 = vmatpush1.bf16.msra.mxu0 %v177
    %1199 = vmatprep.subr.bf16.mxu0 %v176
    %1200 = vmatpush1.bf16.msra.mxu0 %v175
    %1201 = vmatprep.subr.bf16.mxu0 0
    %1202 = vmatpush2.bf16.msra.mxu0 0
    %1203 = vmatprep.subr.bf16.mxu0 0
    %1204 = vmatpush2.bf16.msra.mxu0 0
    %1205 = vmatprep.subr.bf16.mxu0 0
    %1206 = vmatpush2.bf16.msra.mxu0 0
    %1207 = vmatprep.subr.bf16.mxu0 0
    %1208 = vmatpush2.bf16.msra.mxu0 0
    %1209 = vmatprep.subr.bf16.mxu0 0
    %1210 = vmatpush2.bf16.msra.mxu0 0
    %1211 = vmatprep.subr.bf16.mxu0 0
    %1212 = vmatpush2.bf16.msra.mxu0 0
    %1213 = vmatprep.subr.bf16.mxu0 0
    %1214 = vmatpush2.bf16.msra.mxu0 0
    %1215 = vmatprep.subr.bf16.mxu0 0
    %1216 = vmatpush2.bf16.msra.mxu0 0
    %1217 = vmatprep.mubr.bf16.mxu0 0
    %1218 = vmatmul.mubr.bf16.gmra.mxu0 %v1184
    %v1219 = vpop.f32.mrf.mxu0
    %v1220 = vadd.f32 0.0, %v1219
    %v1221 = vpop.f32.mrf.mxu0
    %v1222 = vadd.f32 0.0, %v1221
    %v1223 = vpop.f32.mrf.mxu0
    %v1224 = vpop.f32.mrf.mxu0
    %1225 = vdwg.mxu0
    %v1226 = vadd.f32 %v1180, %v1220
    %v1227 = vadd.f32 %v1181, %v1222
    %v1228 = vxor.u32 %v1226, 2147483648
    %v1229 = vmul.f32 %v1228, 1.442695
    %v1230 = vpow.pop %v1229
    %v1231 = vadd.f32 %v1230, 1.0
    %v1232 = vrcp.pop %v1231
    %v1233 = vmul.f32 1.0, %v1232
    %v1234 = vxor.u32 %v1227, 2147483648
    %v1235 = vmul.f32 %v1234, 1.442695
    %v1236 = vpow.pop %v1235
    %v1237 = vadd.f32 %v1236, 1.0
    %v1238 = vrcp.pop %v1237
    %v1239 = vmul.f32 1.0, %v1238
    %1240 = vmatprep.subr.bf16.mxu0 %v341
    %1241 = vmatpush1.bf16.msra.mxu0 %v340
    %1242 = vmatprep.subr.bf16.mxu0 %v339
    %1243 = vmatpush1.bf16.msra.mxu0 %v338
    %1244 = vmatprep.subr.bf16.mxu0 %v337
    %1245 = vmatpush1.bf16.msra.mxu0 %v336
    %1246 = vmatprep.subr.bf16.mxu0 %v335
    %1247 = vmatpush1.bf16.msra.mxu0 %v334
    %1248 = vmatprep.subr.bf16.mxu0 %v333
    %1249 = vmatpush1.bf16.msra.mxu0 %v332
    %1250 = vmatprep.subr.bf16.mxu0 %v331
    %1251 = vmatpush1.bf16.msra.mxu0 %v330
    %1252 = vmatprep.subr.bf16.mxu0 %v329
    %1253 = vmatpush1.bf16.msra.mxu0 %v328
    %1254 = vmatprep.subr.bf16.mxu0 %v327
    %1255 = vmatpush1.bf16.msra.mxu0 %v326
    %1256 = vmatprep.subr.bf16.mxu0 0
    %1257 = vmatpush2.bf16.msra.mxu0 0
    %1258 = vmatprep.subr.bf16.mxu0 0
    %1259 = vmatpush2.bf16.msra.mxu0 0
    %1260 = vmatprep.subr.bf16.mxu0 0
    %1261 = vmatpush2.bf16.msra.mxu0 0
    %1262 = vmatprep.subr.bf16.mxu0 0
    %1263 = vmatpush2.bf16.msra.mxu0 0
    %1264 = vmatprep.subr.bf16.mxu0 0
    %1265 = vmatpush2.bf16.msra.mxu0 0
    %1266 = vmatprep.subr.bf16.mxu0 0
    %1267 = vmatpush2.bf16.msra.mxu0 0
    %1268 = vmatprep.subr.bf16.mxu0 0
    %1269 = vmatpush2.bf16.msra.mxu0 0
    %1270 = vmatprep.subr.bf16.mxu0 0
    %1271 = vmatpush2.bf16.msra.mxu0 0
    %1272 = vmatprep.mubr.bf16.mxu0 0
    %1273 = vmatmul.mubr.bf16.gmra.mxu0 %v1184
    %v1274 = vpop.f32.mrf.mxu0
    %v1275 = vadd.f32 0.0, %v1274
    %v1276 = vpop.f32.mrf.mxu0
    %v1277 = vadd.f32 0.0, %v1276
    %v1278 = vpop.f32.mrf.mxu0
    %v1279 = vpop.f32.mrf.mxu0
    %1280 = vdwg.mxu0
    %v1281 = vadd.f32 %v1182, %v1275
    %v1282 = vadd.f32 %v1183, %v1277
    %v1283 = vtanh.pop %v1281
    %v1284 = vxor.u32 %v1282, 2147483648
    %v1285 = vmul.f32 %v1284, 1.442695
    %v1286 = vpow.pop %v1285
    %v1287 = vadd.f32 %v1286, 1.0
    %v1288 = vrcp.pop %v1287
    %v1289 = vmul.f32 1.0, %v1288
    %v1290 = vmul.f32 %v1239, %v1166
    %v1291 = vmul.f32 %v1233, %v1283
    %v1292 = vadd.f32 %v1290, %v1291
    %v1293 = vtanh.pop %v1292
    %v1294 = vmul.f32 %v1289, %v1293
    %v1295 = vld [vmem:[#allocation5] sm:$0xff]
    %v1296 = vld [vmem:[#allocation5 + $0x8] sm:$0xff]
    %v1297 = vld [vmem:[#allocation5 + $0x10] sm:$0xff]
    %v1298 = vld [vmem:[#allocation5 + $0x18] sm:$0xff]
    %v1299 = vld [vmem:[#allocation5 + $0x20] sm:$0xff]
    %v1300 = vld [vmem:[#allocation5 + $0x28] sm:$0xff]
    %v1301 = vld [vmem:[#allocation5 + $0x30] sm:$0xff]
    %v1302 = vld [vmem:[#allocation5 + $0x38] sm:$0xff]
    %v1303 = vld [vmem:[#allocation5 + $0x40] sm:$0xff]
    %v1304 = vld [vmem:[#allocation5 + $0x48] sm:$0xff]
    %v1305 = vld [vmem:[#allocation5 + $0x50] sm:$0xff]
    %v1306 = vld [vmem:[#allocation5 + $0x58] sm:$0xff]
    %v1307 = vld [vmem:[#allocation5 + $0x60] sm:$0xff]
    %v1308 = vld [vmem:[#allocation5 + $0x68] sm:$0xff]
    %v1309 = vld [vmem:[#allocation5 + $0x70] sm:$0xff]
    %v1310 = vld [vmem:[#allocation5 + $0x78] sm:$0xff]
    %v1311 = vld [vmem:[%s5] sm:$0x1]
    %v1313 = vlaneseq
    %v1314 = vshrl.u32 %v1313, 7
    %v1315 = vsub.s32 0, %v1314
    %v1316 = vrot.slane %v1311, %v1315
    %1318 = vmatprep.subr.mxu0 0.0
    %1319 = vmatpush1.msra.mxu0 %v1310
    %1320 = vmatprep.subr.mxu0 0.0
    %1321 = vmatpush1.msra.mxu0 %v1309
    %1322 = vmatprep.subr.mxu0 0.0
    %1323 = vmatpush1.msra.mxu0 %v1308
    %1324 = vmatprep.subr.mxu0 0.0
    %1325 = vmatpush1.msra.mxu0 %v1307
    %1326 = vmatprep.subr.mxu0 0.0
    %1327 = vmatpush1.msra.mxu0 %v1306
    %1328 = vmatprep.subr.mxu0 0.0
    %1329 = vmatpush1.msra.mxu0 %v1305
    %1330 = vmatprep.subr.mxu0 0.0
    %1331 = vmatpush1.msra.mxu0 %v1304
    %1332 = vmatprep.subr.mxu0 0.0
    %1333 = vmatpush1.msra.mxu0 %v1303
    %1334 = vmatprep.subr.mxu0 0.0
    %1335 = vmatpush1.msra.mxu0 %v1302
    %1336 = vmatprep.subr.mxu0 0.0
    %1337 = vmatpush1.msra.mxu0 %v1301
    %1338 = vmatprep.subr.mxu0 0.0
    %1339 = vmatpush1.msra.mxu0 %v1300
    %1340 = vmatprep.subr.mxu0 0.0
    %1341 = vmatpush1.msra.mxu0 %v1299
    %1342 = vmatprep.subr.mxu0 0.0
    %1343 = vmatpush1.msra.mxu0 %v1298
    %1344 = vmatprep.subr.mxu0 0.0
    %1345 = vmatpush1.msra.mxu0 %v1297
    %1346 = vmatprep.subr.mxu0 0.0
    %1347 = vmatpush1.msra.mxu0 %v1296
    %1348 = vmatprep.subr.mxu0 0.0
    %1349 = vmatpush1.msra.mxu0 %v1295
    %1350 = vmatprep.subr.mxu0 0.0
    %1351 = vmatpush2.msra.mxu0 0.0
    %1352 = vmatprep.subr.mxu0 0.0
    %1353 = vmatpush2.msra.mxu0 0.0
    %1354 = vmatprep.subr.mxu0 0.0
    %1355 = vmatpush2.msra.mxu0 0.0
    %1356 = vmatprep.subr.mxu0 0.0
    %1357 = vmatpush2.msra.mxu0 0.0
    %1358 = vmatprep.subr.mxu0 0.0
    %1359 = vmatpush2.msra.mxu0 0.0
    %1360 = vmatprep.subr.mxu0 0.0
    %1361 = vmatpush2.msra.mxu0 0.0
    %1362 = vmatprep.subr.mxu0 0.0
    %1363 = vmatpush2.msra.mxu0 0.0
    %1364 = vmatprep.subr.mxu0 0.0
    %1365 = vmatpush2.msra.mxu0 0.0
    %1366 = vmatprep.subr.mxu0 0.0
    %1367 = vmatpush2.msra.mxu0 0.0
    %1368 = vmatprep.subr.mxu0 0.0
    %1369 = vmatpush2.msra.mxu0 0.0
    %1370 = vmatprep.subr.mxu0 0.0
    %1371 = vmatpush2.msra.mxu0 0.0
    %1372 = vmatprep.subr.mxu0 0.0
    %1373 = vmatpush2.msra.mxu0 0.0
    %1374 = vmatprep.subr.mxu0 0.0
    %1375 = vmatpush2.msra.mxu0 0.0
    %1376 = vmatprep.subr.mxu0 0.0
    %1377 = vmatpush2.msra.mxu0 0.0
    %1378 = vmatprep.subr.mxu0 0.0
    %1379 = vmatpush2.msra.mxu0 0.0
    %1380 = vmatprep.subr.mxu0 0.0
    %1381 = vmatpush2.msra.mxu0 0.0
    %1382 = vmatprep.mubr.f32.mxu0 0.0
    %1383 = vmatmul.mubr.f32.gmra.mxu0 %v1294
    %v1384 = vpop.f32.mrf.mxu0
    %v1385 = vadd.f32 %v1316, %v1384
    %v1386 = vpop.f32.mrf.mxu0
    %1387 = vdwg.mxu0
    %1388 = vst [vmem:[#allocation7] sm:$0xff] %v1385
    // Predicated region
    $region34: #{tpu_custom_call.1} parent=1 // pred_check
      _
    $region35: #{tpu_custom_call.1} parent=1 // pred_check_branch
      %1390 = sbr.rel (0) target = $region37
    $region36: #{tpu_custom_call.1} parent=1 // pred_region
      %s1392 = ssub.s32 128, 128
      %1393 = vsyncadd [#allocation4], %s1392
      %s1395 = sshll.u32 [#allocation7], 4
      %s1396 = int_to_ptr.vmem [resolvable:$true] %s1395
      %1398 = dma.vmem_to_hbm [thread:$0]  %s1396, 128, %s6, [#allocation4]
    $region37: #{tpu_custom_call.1} parent=1 // pred_fallthru
      _
    // Predicated region
    $region38: #{tpu_custom_call.1} parent=1 // pred_check
      _
    $region39: #{tpu_custom_call.1} parent=1 // pred_check_branch
      %1400 = sbr.rel (0) target = $region41
    $region40: #{tpu_custom_call.1} parent=1 // pred_region
      %1401 = dma.done [#allocation4], 128
    $region41: #{tpu_custom_call.1} parent=1 // pred_fallthru
      _
    %1402 = vsyncpa [#allocation3], 1
    %1403 = vsyncpa [#allocation6], 1
    %1404 = vsyncpa [#allocation4], 1

</llo_original>
